<compile_context>
chip_gen: v6e
topology: v6e:2x2x1
jax: 0.10.0
libtpu: 0.0.40
codegen_flags: <defaults>
</compile_context>

<pallas_src>
import functools

import jax
import jax.numpy as jnp
from jax.experimental import pallas as pl
from jax.experimental.pallas import tpu as pltpu

INPUT_DIM = 24
HIDDEN_DIM = 128
OUTPUT_DIM = 64
NUM_GROUPS = 4
EPS = 1e-5


def _elu(x):
    return jnp.where(x > 0.0, x, jnp.exp(jnp.minimum(x, 0.0)) - 1.0)


def _silu(x):
    return x * jax.nn.sigmoid(x)


def _group_norm(h, gsum, group_mat_bf, group_mat_t_bf, gamma, beta):
    """GroupNorm for a (B, C) activation with G groups.

    h:              (B, C) f32 activations (post-Linear).
    gsum:           (B, G) f32 per-group sums (folded into the preceding Linear).
    group_mat_bf:   (C, G) one-hot membership, bf16 (exact) -> h*h reduction.
    group_mat_t_bf: (G, C) precomputed transpose, bf16      -> stat broadcast.
    """
    C = h.shape[-1]
    G = group_mat_bf.shape[-1]
    inv_gs = 1.0 / (C // G)
    # Sum of squares via a bf16 MXU dot with f32 accumulation (f32 dots cost ~3x
    # the MXU passes).  Stats themselves stay f32.
    hb = h.astype(jnp.bfloat16)
    gsumsq = jnp.dot(hb * hb, group_mat_bf, preferred_element_type=jnp.float32)
    mean_g = gsum * inv_gs
    var_g = gsumsq * inv_gs - mean_g * mean_g              # biased variance (PyTorch)
    rstd_g = jax.lax.rsqrt(jnp.maximum(var_g, 0.0) + EPS)  # rsqrt at (B, G)
    # Broadcast group stats back to channels with tiny K=G bf16 matmuls.
    mean_c = jnp.dot(mean_g.astype(jnp.bfloat16), group_mat_t_bf,
                     preferred_element_type=jnp.float32)
    rstd_c = jnp.dot(rstd_g.astype(jnp.bfloat16), group_mat_t_bf,
                     preferred_element_type=jnp.float32)
    return (h - mean_c) * rstd_c * gamma + beta


def bottom_model_kernel(
    x_ref,
    w1c_ref, b1c_ref, g1_ref, be1_ref, m1_ref, m1t_ref,
    w2c_ref, b2c_ref, g2_ref, be2_ref, m2_ref, m2t_ref,
    w3_ref, b3_ref, gl_ref, bl_ref,
    o_ref,
    *, act_dtype,
):
    bf = jnp.bfloat16
    x = x_ref[...].astype(bf)
    C1 = 2 * HIDDEN_DIM
    C2 = HIDDEN_DIM

    # ---- Block 1: Linear(24 -> 256) [+ folded gsum] + GroupNorm(4, 256) + ELU (+ Dropout = id)
    h1c = jnp.dot(x, w1c_ref[...], preferred_element_type=jnp.float32) + b1c_ref[...]
    h1 = h1c[:, :C1]            # tile-aligned slice
    gsum1 = h1c[:, C1:]         # (B, 4) folded group sums
    h1 = _group_norm(h1, gsum1, m1_ref[...], m1t_ref[...], g1_ref[...], be1_ref[...])
    h1b = _elu(h1.astype(act_dtype)).astype(bf)   # bf16 EUP/VPU path on v6e/v7x

    # ---- Block 2: Linear(256 -> 128) [+ folded gsum] + GroupNorm(4, 128) + ELU (+ Dropout = id)
    h2c = jnp.dot(h1b, w2c_ref[...], preferred_element_type=jnp.float32) + b2c_ref[...]
    h2 = h2c[:, :C2]
    gsum2 = h2c[:, C2:]
    h2 = _group_norm(h2, gsum2, m2_ref[...], m2t_ref[...], g2_ref[...], be2_ref[...])
    h2b = _elu(h2.astype(act_dtype)).astype(bf)

    # ---- Block 3: Linear(128 -> 64) + LayerNorm(64) + SiLU  (stats in f32, centered)
    h3 = jnp.dot(h2b, w3_ref[...], preferred_element_type=jnp.float32) + b3_ref[...]
    mean = jnp.mean(h3, axis=-1, keepdims=True)
    diff = h3 - mean
    var = jnp.mean(diff * diff, axis=-1, keepdims=True)     # biased (PyTorch)
    h3 = diff * jax.lax.rsqrt(var + EPS)
    h3 = h3 * gl_ref[...] + bl_ref[...]
    o_ref[...] = _silu(h3).astype(o_ref.dtype)


def _group_membership(C, G):
    ch = jnp.arange(C)
    grp = jnp.arange(G)
    return (ch[:, None] // (C // G) == grp[None, :]).astype(jnp.float32)


def _round_up(n, m):
    return ((n + m - 1) // m) * m


def _activation_dtype():
    """bf16 activations on v6e/v7x (packed bf16 VPU/EUP); f32 on v5-and-older."""
    try:
        kind = jax.devices()[0].device_kind.lower()
    except Exception:
        return jnp.bfloat16
    if any(t in kind for t in ("v2", "v3", "v4", "v5")):
        return jnp.float32
    return jnp.bfloat16


@functools.partial(jax.jit, static_argnames=("tile_b",))
def bottom_model(x, params, tile_b=2048):
    """Fused forward pass.

    tile_b=2048 amortizes per-grid-step overhead; vmem_limit_bytes is raised to
    48 MiB (needed on v5e's 16 MiB default, within v7x's 64 MiB/TC).  tb is
    chosen so the grid has >= 2 steps whenever the batch allows it so v7x's two
    TensorCores both get work under the "parallel" batch axis.
    """
    B = x.shape[0]
    rb = _round_up(max(B, 1), 8)
    if rb >= 16:
        # Aim for at least two grid steps (v7x megacore), each a multiple of 8.
        tb = min(tile_b, _round_up(rb // 2, 8))
    else:
        tb = rb
    tb = max(tb, 8)
    Bp = _round_up(B, tb)
    if Bp != B:
        x = jnp.pad(x, ((0, Bp - B), (0, 0)))  # padded rows are sliced off below

    m1 = _group_membership(2 * HIDDEN_DIM, NUM_GROUPS)
    m2 = _group_membership(HIDDEN_DIM, NUM_GROUPS)

    w1, b1 = params["w1"], params["b1"]
    w2, b2 = params["w2"], params["b2"]
    w3, b3 = params["w3"], params["b3"]
    # Fold the per-group sums into the main weights: one dot per block, the
    # extra 4 columns ride the same MXU N-tile on v6e/v7x.
    w1c = jnp.concatenate([w1, w1 @ m1], axis=1)   # (24, 260)
    b1c = jnp.concatenate([b1, b1 @ m1], axis=1)   # (1, 260)
    w2c = jnp.concatenate([w2, w2 @ m2], axis=1)   # (256, 132)
    b2c = jnp.concatenate([b2, b2 @ m2], axis=1)   # (1, 132)

    bf = jnp.bfloat16
    args = (
        x,
        w1c.astype(bf), b1c, params["g1"], params["be1"], m1.astype(bf), m1.T.astype(bf),
        w2c.astype(bf), b2c, params["g2"], params["be2"], m2.astype(bf), m2.T.astype(bf),
        w3.astype(bf), b3, params["gl"], params["bl"],
    )

    # Batch-tiled x/out; everything else VMEM-resident (block 0 every step).
    x_spec = pl.BlockSpec((tb, INPUT_DIM), lambda i: (i, 0))
    out_spec = pl.BlockSpec((tb, OUTPUT_DIM), lambda i: (i, 0))
    in_specs = [x_spec] + [pl.BlockSpec(a.shape, lambda i: (0, 0)) for a in args[1:]]

    weight_bytes = sum(int(a.size) * a.dtype.itemsize for a in args[1:])
    flops_per_row = 2 * (
        INPUT_DIM * (2 * HIDDEN_DIM + NUM_GROUPS)        # fused Linear1 + gsum1
        + (2 * HIDDEN_DIM) * (HIDDEN_DIM + NUM_GROUPS)   # fused Linear2 + gsum2
        + HIDDEN_DIM * OUTPUT_DIM                        # Linear3
        + (2 * HIDDEN_DIM) * NUM_GROUPS                  # gsumsq block 1
        + HIDDEN_DIM * NUM_GROUPS                        # gsumsq block 2
        + 2 * NUM_GROUPS * (2 * HIDDEN_DIM)              # mean/rstd broadcast block 1
        + 2 * NUM_GROUPS * HIDDEN_DIM                    # mean/rstd broadcast block 2
    )
    flops = Bp * flops_per_row
    transcendentals = Bp * (2 * HIDDEN_DIM + HIDDEN_DIM + OUTPUT_DIM + 2 * NUM_GROUPS + 1)
    bytes_accessed = Bp * (INPUT_DIM + OUTPUT_DIM) * 4 + weight_bytes

    kernel = functools.partial(bottom_model_kernel, act_dtype=_activation_dtype())

    out = pl.pallas_call(
        kernel,
        out_shape=jax.ShapeDtypeStruct((Bp, OUTPUT_DIM), jnp.float32),
        grid=(Bp // tb,),
        in_specs=in_specs,
        out_specs=out_spec,
        compiler_params=pltpu.CompilerParams(
            dimension_semantics=("parallel",),
            vmem_limit_bytes=48 * 1024 * 1024,
        ),
        cost_estimate=pl.CostEstimate(
            flops=flops,
            transcendentals=transcendentals,
            bytes_accessed=bytes_accessed,
        ),
    )(*args)
    return out[:B] if Bp != B else out


def init_params(key):
    """Deterministic init; weights stored as (in_features, out_features)."""
    ks = jax.random.split(key, 6)

    def linear(kw, kb, fan_in, fan_out):
        bound = 1.0 / jnp.sqrt(fan_in)
        w = jax.random.uniform(kw, (fan_in, fan_out), jnp.float32, -bound, bound)
        b = jax.random.uniform(kb, (1, fan_out), jnp.float32, -bound, bound)
        return w, b

    w1, b1 = linear(ks[0], ks[1], INPUT_DIM, 2 * HIDDEN_DIM)
    w2, b2 = linear(ks[2], ks[3], 2 * HIDDEN_DIM, HIDDEN_DIM)
    w3, b3 = linear(ks[4], ks[5], HIDDEN_DIM, OUTPUT_DIM)
    return {
        "w1": w1, "b1": b1,
        "g1": jnp.ones((1, 2 * HIDDEN_DIM), jnp.float32),
        "be1": jnp.zeros((1, 2 * HIDDEN_DIM), jnp.float32),
        "w2": w2, "b2": b2,
        "g2": jnp.ones((1, HIDDEN_DIM), jnp.float32),
        "be2": jnp.zeros((1, HIDDEN_DIM), jnp.float32),
        "w3": w3, "b3": b3,
        "gl": jnp.ones((1, OUTPUT_DIM), jnp.float32),
        "bl": jnp.zeros((1, OUTPUT_DIM), jnp.float32),
    }


def _reference(x, params):
    """Pure-f32 JAX reference mirroring the PyTorch module (inference mode)."""
    def gn(h, gamma, beta, G):
        B, C = h.shape
        hg = h.reshape(B, G, C // G)
        mean = hg.mean(-1, keepdims=True)
        var = ((hg - mean) ** 2).mean(-1, keepdims=True)
        hn = ((hg - mean) / jnp.sqrt(var + EPS)).reshape(B, C)
        return hn * gamma + beta

    h = x @ params["w1"] + params["b1"]
    h = jax.nn.elu(gn(h, params["g1"], params["be1"], NUM_GROUPS))
    h = h @ params["w2"] + params["b2"]
    h = jax.nn.elu(gn(h, params["g2"], params["be2"], NUM_GROUPS))
    h = h @ params["w3"] + params["b3"]
    mean = h.mean(-1, keepdims=True)
    var = ((h - mean) ** 2).mean(-1, keepdims=True)
    h = (h - mean) / jnp.sqrt(var + EPS) * params["gl"] + params["bl"]
    return h * jax.nn.sigmoid(h)


if __name__ == "__main__":
    key = jax.random.PRNGKey(0)
    k_x, k_p = jax.random.split(key)
    params = init_params(k_p)

    # Small smoke test (single 8-row grid step).
    B = 8
    x = jax.random.normal(k_x, (B, INPUT_DIM), jnp.float32)
    out = jax.block_until_ready(bottom_model(x, params))
    ref = _reference(x, params)
    assert out.shape == (B, OUTPUT_DIM)
    # Kernel uses bf16 MXU operands (incl. GroupNorm stat/broadcast dots) with
    # f32 accumulation -> compare against the pure-f32 reference at bf16 tolerance.
    err = float(jnp.max(jnp.abs(out - ref)))
    assert jnp.allclose(out, ref, rtol=5e-2, atol=5e-2), err

    # Multi-step grid + ragged batch (40 rows, tile 16 -> padded to 48, 3 steps).
    x2 = jax.random.normal(jax.random.PRNGKey(1), (40, INPUT_DIM), jnp.float32)
    out2 = jax.block_until_ready(bottom_model(x2, params, tile_b=16))
    ref2 = _reference(x2, params)
    err2 = float(jnp.max(jnp.abs(out2 - ref2)))
    assert out2.shape == (40, OUTPUT_DIM)
    assert jnp.allclose(out2, ref2, rtol=5e-2, atol=5e-2), err2

    print("KERNEL_OK")
</pallas_src>

<mosaic_0001>
module attributes {stable_mosaic.version = 11 : i64} {
  func.func @bottom_model_kernel(%arg0: i32, %arg1: memref<8x24xf32, #tpu.memory_space<vmem>>, %arg2: memref<24x260xbf16, #tpu.memory_space<vmem>>, %arg3: memref<1x260xf32, #tpu.memory_space<vmem>>, %arg4: memref<1x256xf32, #tpu.memory_space<vmem>>, %arg5: memref<1x256xf32, #tpu.memory_space<vmem>>, %arg6: memref<256x4xbf16, #tpu.memory_space<vmem>>, %arg7: memref<4x256xbf16, #tpu.memory_space<vmem>>, %arg8: memref<256x132xbf16, #tpu.memory_space<vmem>>, %arg9: memref<1x132xf32, #tpu.memory_space<vmem>>, %arg10: memref<1x128xf32, #tpu.memory_space<vmem>>, %arg11: memref<1x128xf32, #tpu.memory_space<vmem>>, %arg12: memref<128x4xbf16, #tpu.memory_space<vmem>>, %arg13: memref<4x128xbf16, #tpu.memory_space<vmem>>, %arg14: memref<128x64xbf16, #tpu.memory_space<vmem>>, %arg15: memref<1x64xf32, #tpu.memory_space<vmem>>, %arg16: memref<1x64xf32, #tpu.memory_space<vmem>>, %arg17: memref<1x64xf32, #tpu.memory_space<vmem>>, %arg18: memref<8x64xf32, #tpu.memory_space<vmem>>) attributes {dimension_semantics = [#tpu.dimension_semantics<parallel>], iteration_bounds = array<i64: 1>, scalar_prefetch = 0 : i64, scratch_operands = 0 : i64, tpu.core_type = #tpu.core_type<tc>, window_params = [{transform_indices = @transform_0, window_bounds = array<i64: 8, 24>}, {pipeline_mode = #tpu.pipeline_mode<synchronous>, transform_indices = @transform_1, window_bounds = array<i64: 24, 260>}, {pipeline_mode = #tpu.pipeline_mode<synchronous>, transform_indices = @transform_2, window_bounds = array<i64: 1, 260>}, {pipeline_mode = #tpu.pipeline_mode<synchronous>, transform_indices = @transform_3, window_bounds = array<i64: 1, 256>}, {pipeline_mode = #tpu.pipeline_mode<synchronous>, transform_indices = @transform_4, window_bounds = array<i64: 1, 256>}, {pipeline_mode = #tpu.pipeline_mode<synchronous>, transform_indices = @transform_5, window_bounds = array<i64: 256, 4>}, {pipeline_mode = #tpu.pipeline_mode<synchronous>, transform_indices = @transform_6, window_bounds = array<i64: 4, 256>}, {pipeline_mode = #tpu.pipeline_mode<synchronous>, transform_indices = @transform_7, window_bounds = array<i64: 256, 132>}, {pipeline_mode = #tpu.pipeline_mode<synchronous>, transform_indices = @transform_8, window_bounds = array<i64: 1, 132>}, {pipeline_mode = #tpu.pipeline_mode<synchronous>, transform_indices = @transform_9, window_bounds = array<i64: 1, 128>}, {pipeline_mode = #tpu.pipeline_mode<synchronous>, transform_indices = @transform_10, window_bounds = array<i64: 1, 128>}, {pipeline_mode = #tpu.pipeline_mode<synchronous>, transform_indices = @transform_11, window_bounds = array<i64: 128, 4>}, {pipeline_mode = #tpu.pipeline_mode<synchronous>, transform_indices = @transform_12, window_bounds = array<i64: 4, 128>}, {pipeline_mode = #tpu.pipeline_mode<synchronous>, transform_indices = @transform_13, window_bounds = array<i64: 128, 64>}, {pipeline_mode = #tpu.pipeline_mode<synchronous>, transform_indices = @transform_14, window_bounds = array<i64: 1, 64>}, {pipeline_mode = #tpu.pipeline_mode<synchronous>, transform_indices = @transform_15, window_bounds = array<i64: 1, 64>}, {pipeline_mode = #tpu.pipeline_mode<synchronous>, transform_indices = @transform_16, window_bounds = array<i64: 1, 64>}, {transform_indices = @transform_17, window_bounds = array<i64: 8, 64>}]} {
    %c0 = arith.constant 0 : index
    %c0_0 = arith.constant 0 : index
    %0 = vector.load %arg1[%c0, %c0_0] : memref<8x24xf32, #tpu.memory_space<vmem>>, vector<8x24xf32>
    %1 = arith.truncf %0 : vector<8x24xf32> to vector<8x24xbf16>
    %c0_1 = arith.constant 0 : index
    %c0_2 = arith.constant 0 : index
    %2 = vector.load %arg2[%c0_1, %c0_2] : memref<24x260xbf16, #tpu.memory_space<vmem>>, vector<24x260xbf16>
    %cst = arith.constant dense<0.000000e+00> : vector<8x260xf32>
    %3 = tpu.matmul %1, %2, %cst {dimension_numbers = #tpu.dot_dimension_numbers<[1], [0], [0], [1], [0, 0, 1, 1], [], []>} : vector<8x24xbf16>, vector<24x260xbf16>, vector<8x260xf32> -> vector<8x260xf32>
    %c0_3 = arith.constant 0 : index
    %c0_4 = arith.constant 0 : index
    %4 = vector.load %arg3[%c0_3, %c0_4] : memref<1x260xf32, #tpu.memory_space<vmem>>, vector<1x260xf32>
    %5 = vector.broadcast %4 : vector<1x260xf32> to vector<8x260xf32>
    %6 = arith.addf %3, %5 : vector<8x260xf32>
    %7 = vector.extract_strided_slice %6 {offsets = [0, 0], sizes = [8, 256], strides = [1, 1]} : vector<8x260xf32> to vector<8x256xf32>
    %8 = vector.extract_strided_slice %6 {offsets = [0, 256], sizes = [8, 4], strides = [1, 1]} : vector<8x260xf32> to vector<8x4xf32>
    %c0_5 = arith.constant 0 : index
    %c0_6 = arith.constant 0 : index
    %9 = vector.load %arg6[%c0_5, %c0_6] : memref<256x4xbf16, #tpu.memory_space<vmem>>, vector<256x4xbf16>
    %c0_7 = arith.constant 0 : index
    %c0_8 = arith.constant 0 : index
    %10 = vector.load %arg7[%c0_7, %c0_8] : memref<4x256xbf16, #tpu.memory_space<vmem>>, vector<4x256xbf16>
    %c0_9 = arith.constant 0 : index
    %c0_10 = arith.constant 0 : index
    %11 = vector.load %arg4[%c0_9, %c0_10] : memref<1x256xf32, #tpu.memory_space<vmem>>, vector<1x256xf32>
    %c0_11 = arith.constant 0 : index
    %c0_12 = arith.constant 0 : index
    %12 = vector.load %arg5[%c0_11, %c0_12] : memref<1x256xf32, #tpu.memory_space<vmem>>, vector<1x256xf32>
    %13 = arith.truncf %7 : vector<8x256xf32> to vector<8x256xbf16>
    %14 = arith.mulf %13, %13 : vector<8x256xbf16>
    %cst_13 = arith.constant dense<0.000000e+00> : vector<8x4xf32>
    %15 = tpu.matmul %14, %9, %cst_13 {dimension_numbers = #tpu.dot_dimension_numbers<[1], [0], [0], [1], [0, 0, 1, 1], [], []>} : vector<8x256xbf16>, vector<256x4xbf16>, vector<8x4xf32> -> vector<8x4xf32>
    %cst_14 = arith.constant 1.562500e-02 : f32
    %16 = vector.broadcast %cst_14 : f32 to vector<8x4xf32>
    %17 = arith.mulf %8, %16 : vector<8x4xf32>
    %cst_15 = arith.constant 1.562500e-02 : f32
    %18 = vector.broadcast %cst_15 : f32 to vector<8x4xf32>
    %19 = arith.mulf %15, %18 : vector<8x4xf32>
    %20 = arith.mulf %17, %17 : vector<8x4xf32>
    %21 = arith.subf %19, %20 : vector<8x4xf32>
    %cst_16 = arith.constant 0.000000e+00 : f32
    %22 = vector.broadcast %cst_16 : f32 to vector<8x4xf32>
    %23 = arith.maximumf %21, %22 : vector<8x4xf32>
    %cst_17 = arith.constant 9.99999974E-6 : f32
    %24 = vector.broadcast %cst_17 : f32 to vector<8x4xf32>
    %25 = arith.addf %23, %24 : vector<8x4xf32>
    %26 = math.rsqrt %25 : vector<8x4xf32>
    %27 = arith.truncf %17 : vector<8x4xf32> to vector<8x4xbf16>
    %cst_18 = arith.constant dense<0.000000e+00> : vector<8x256xf32>
    %28 = tpu.matmul %27, %10, %cst_18 {dimension_numbers = #tpu.dot_dimension_numbers<[1], [0], [0], [1], [0, 0, 1, 1], [], []>} : vector<8x4xbf16>, vector<4x256xbf16>, vector<8x256xf32> -> vector<8x256xf32>
    %29 = arith.truncf %26 : vector<8x4xf32> to vector<8x4xbf16>
    %cst_19 = arith.constant dense<0.000000e+00> : vector<8x256xf32>
    %30 = tpu.matmul %29, %10, %cst_19 {dimension_numbers = #tpu.dot_dimension_numbers<[1], [0], [0], [1], [0, 0, 1, 1], [], []>} : vector<8x4xbf16>, vector<4x256xbf16>, vector<8x256xf32> -> vector<8x256xf32>
    %31 = arith.subf %7, %28 : vector<8x256xf32>
    %32 = arith.mulf %31, %30 : vector<8x256xf32>
    %33 = vector.broadcast %11 : vector<1x256xf32> to vector<8x256xf32>
    %34 = arith.mulf %32, %33 : vector<8x256xf32>
    %35 = vector.broadcast %12 : vector<1x256xf32> to vector<8x256xf32>
    %36 = arith.addf %34, %35 : vector<8x256xf32>
    %37 = arith.truncf %36 : vector<8x256xf32> to vector<8x256xbf16>
    %cst_20 = arith.constant 0.000000e+00 : bf16
    %38 = vector.broadcast %cst_20 : bf16 to vector<8x256xbf16>
    %39 = arith.cmpf ogt, %37, %38 : vector<8x256xbf16>
    %cst_21 = arith.constant 0.000000e+00 : bf16
    %40 = vector.broadcast %cst_21 : bf16 to vector<8x256xbf16>
    %41 = arith.minimumf %37, %40 : vector<8x256xbf16>
    %42 = math.exp %41 : vector<8x256xbf16>
    %cst_22 = arith.constant 1.000000e+00 : bf16
    %43 = vector.broadcast %cst_22 : bf16 to vector<8x256xbf16>
    %44 = arith.subf %42, %43 : vector<8x256xbf16>
    %45 = arith.select %39, %37, %44 : vector<8x256xi1>, vector<8x256xbf16>
    %c0_23 = arith.constant 0 : index
    %c0_24 = arith.constant 0 : index
    %46 = vector.load %arg8[%c0_23, %c0_24] : memref<256x132xbf16, #tpu.memory_space<vmem>>, vector<256x132xbf16>
    %cst_25 = arith.constant dense<0.000000e+00> : vector<8x132xf32>
    %47 = tpu.matmul %45, %46, %cst_25 {dimension_numbers = #tpu.dot_dimension_numbers<[1], [0], [0], [1], [0, 0, 1, 1], [], []>} : vector<8x256xbf16>, vector<256x132xbf16>, vector<8x132xf32> -> vector<8x132xf32>
    %c0_26 = arith.constant 0 : index
    %c0_27 = arith.constant 0 : index
    %48 = vector.load %arg9[%c0_26, %c0_27] : memref<1x132xf32, #tpu.memory_space<vmem>>, vector<1x132xf32>
    %49 = vector.broadcast %48 : vector<1x132xf32> to vector<8x132xf32>
    %50 = arith.addf %47, %49 : vector<8x132xf32>
    %51 = vector.extract_strided_slice %50 {offsets = [0, 0], sizes = [8, 128], strides = [1, 1]} : vector<8x132xf32> to vector<8x128xf32>
    %52 = vector.extract_strided_slice %50 {offsets = [0, 128], sizes = [8, 4], strides = [1, 1]} : vector<8x132xf32> to vector<8x4xf32>
    %c0_28 = arith.constant 0 : index
    %c0_29 = arith.constant 0 : index
    %53 = vector.load %arg12[%c0_28, %c0_29] : memref<128x4xbf16, #tpu.memory_space<vmem>>, vector<128x4xbf16>
    %c0_30 = arith.constant 0 : index
    %c0_31 = arith.constant 0 : index
    %54 = vector.load %arg13[%c0_30, %c0_31] : memref<4x128xbf16, #tpu.memory_space<vmem>>, vector<4x128xbf16>
    %c0_32 = arith.constant 0 : index
    %c0_33 = arith.constant 0 : index
    %55 = vector.load %arg10[%c0_32, %c0_33] : memref<1x128xf32, #tpu.memory_space<vmem>>, vector<1x128xf32>
    %c0_34 = arith.constant 0 : index
    %c0_35 = arith.constant 0 : index
    %56 = vector.load %arg11[%c0_34, %c0_35] : memref<1x128xf32, #tpu.memory_space<vmem>>, vector<1x128xf32>
    %57 = arith.truncf %51 : vector<8x128xf32> to vector<8x128xbf16>
    %58 = arith.mulf %57, %57 : vector<8x128xbf16>
    %cst_36 = arith.constant dense<0.000000e+00> : vector<8x4xf32>
    %59 = tpu.matmul %58, %53, %cst_36 {dimension_numbers = #tpu.dot_dimension_numbers<[1], [0], [0], [1], [0, 0, 1, 1], [], []>} : vector<8x128xbf16>, vector<128x4xbf16>, vector<8x4xf32> -> vector<8x4xf32>
    %cst_37 = arith.constant 3.125000e-02 : f32
    %60 = vector.broadcast %cst_37 : f32 to vector<8x4xf32>
    %61 = arith.mulf %52, %60 : vector<8x4xf32>
    %cst_38 = arith.constant 3.125000e-02 : f32
    %62 = vector.broadcast %cst_38 : f32 to vector<8x4xf32>
    %63 = arith.mulf %59, %62 : vector<8x4xf32>
    %64 = arith.mulf %61, %61 : vector<8x4xf32>
    %65 = arith.subf %63, %64 : vector<8x4xf32>
    %cst_39 = arith.constant 0.000000e+00 : f32
    %66 = vector.broadcast %cst_39 : f32 to vector<8x4xf32>
    %67 = arith.maximumf %65, %66 : vector<8x4xf32>
    %cst_40 = arith.constant 9.99999974E-6 : f32
    %68 = vector.broadcast %cst_40 : f32 to vector<8x4xf32>
    %69 = arith.addf %67, %68 : vector<8x4xf32>
    %70 = math.rsqrt %69 : vector<8x4xf32>
    %71 = arith.truncf %61 : vector<8x4xf32> to vector<8x4xbf16>
    %cst_41 = arith.constant dense<0.000000e+00> : vector<8x128xf32>
    %72 = tpu.matmul %71, %54, %cst_41 {dimension_numbers = #tpu.dot_dimension_numbers<[1], [0], [0], [1], [0, 0, 1, 1], [], []>} : vector<8x4xbf16>, vector<4x128xbf16>, vector<8x128xf32> -> vector<8x128xf32>
    %73 = arith.truncf %70 : vector<8x4xf32> to vector<8x4xbf16>
    %cst_42 = arith.constant dense<0.000000e+00> : vector<8x128xf32>
    %74 = tpu.matmul %73, %54, %cst_42 {dimension_numbers = #tpu.dot_dimension_numbers<[1], [0], [0], [1], [0, 0, 1, 1], [], []>} : vector<8x4xbf16>, vector<4x128xbf16>, vector<8x128xf32> -> vector<8x128xf32>
    %75 = arith.subf %51, %72 : vector<8x128xf32>
    %76 = arith.mulf %75, %74 : vector<8x128xf32>
    %77 = vector.broadcast %55 : vector<1x128xf32> to vector<8x128xf32>
    %78 = arith.mulf %76, %77 : vector<8x128xf32>
    %79 = vector.broadcast %56 : vector<1x128xf32> to vector<8x128xf32>
    %80 = arith.addf %78, %79 : vector<8x128xf32>
    %81 = arith.truncf %80 : vector<8x128xf32> to vector<8x128xbf16>
    %cst_43 = arith.constant 0.000000e+00 : bf16
    %82 = vector.broadcast %cst_43 : bf16 to vector<8x128xbf16>
    %83 = arith.cmpf ogt, %81, %82 : vector<8x128xbf16>
    %cst_44 = arith.constant 0.000000e+00 : bf16
    %84 = vector.broadcast %cst_44 : bf16 to vector<8x128xbf16>
    %85 = arith.minimumf %81, %84 : vector<8x128xbf16>
    %86 = math.exp %85 : vector<8x128xbf16>
    %cst_45 = arith.constant 1.000000e+00 : bf16
    %87 = vector.broadcast %cst_45 : bf16 to vector<8x128xbf16>
    %88 = arith.subf %86, %87 : vector<8x128xbf16>
    %89 = arith.select %83, %81, %88 : vector<8x128xi1>, vector<8x128xbf16>
    %c0_46 = arith.constant 0 : index
    %c0_47 = arith.constant 0 : index
    %90 = vector.load %arg14[%c0_46, %c0_47] : memref<128x64xbf16, #tpu.memory_space<vmem>>, vector<128x64xbf16>
    %cst_48 = arith.constant dense<0.000000e+00> : vector<8x64xf32>
    %91 = tpu.matmul %89, %90, %cst_48 {dimension_numbers = #tpu.dot_dimension_numbers<[1], [0], [0], [1], [0, 0, 1, 1], [], []>} : vector<8x128xbf16>, vector<128x64xbf16>, vector<8x64xf32> -> vector<8x64xf32>
    %c0_49 = arith.constant 0 : index
    %c0_50 = arith.constant 0 : index
    %92 = vector.load %arg15[%c0_49, %c0_50] : memref<1x64xf32, #tpu.memory_space<vmem>>, vector<1x64xf32>
    %93 = vector.broadcast %92 : vector<1x64xf32> to vector<8x64xf32>
    %94 = arith.addf %91, %93 : vector<8x64xf32>
    %cst_51 = arith.constant dense<0.000000e+00> : vector<8xf32>
    %95 = vector.multi_reduction <add>, %94, %cst_51 [1] : vector<8x64xf32> to vector<8xf32>
    %96 = vector.shape_cast %95 : vector<8xf32> to vector<8x1xf32>
    %cst_52 = arith.constant 6.400000e+01 : f32
    %97 = vector.broadcast %cst_52 : f32 to vector<8x1xf32>
    %98 = arith.divf %96, %97 : vector<8x1xf32>
    %99 = vector.broadcast %98 : vector<8x1xf32> to vector<8x64xf32>
    %100 = arith.subf %94, %99 : vector<8x64xf32>
    %101 = arith.mulf %100, %100 : vector<8x64xf32>
    %cst_53 = arith.constant dense<0.000000e+00> : vector<8xf32>
    %102 = vector.multi_reduction <add>, %101, %cst_53 [1] : vector<8x64xf32> to vector<8xf32>
    %103 = vector.shape_cast %102 : vector<8xf32> to vector<8x1xf32>
    %cst_54 = arith.constant 6.400000e+01 : f32
    %104 = vector.broadcast %cst_54 : f32 to vector<8x1xf32>
    %105 = arith.divf %103, %104 : vector<8x1xf32>
    %cst_55 = arith.constant 9.99999974E-6 : f32
    %106 = vector.broadcast %cst_55 : f32 to vector<8x1xf32>
    %107 = arith.addf %105, %106 : vector<8x1xf32>
    %108 = math.rsqrt %107 : vector<8x1xf32>
    %109 = vector.broadcast %108 : vector<8x1xf32> to vector<8x64xf32>
    %110 = arith.mulf %100, %109 : vector<8x64xf32>
    %c0_56 = arith.constant 0 : index
    %c0_57 = arith.constant 0 : index
    %111 = vector.load %arg16[%c0_56, %c0_57] : memref<1x64xf32, #tpu.memory_space<vmem>>, vector<1x64xf32>
    %112 = vector.broadcast %111 : vector<1x64xf32> to vector<8x64xf32>
    %113 = arith.mulf %110, %112 : vector<8x64xf32>
    %c0_58 = arith.constant 0 : index
    %c0_59 = arith.constant 0 : index
    %114 = vector.load %arg17[%c0_58, %c0_59] : memref<1x64xf32, #tpu.memory_space<vmem>>, vector<1x64xf32>
    %115 = vector.broadcast %114 : vector<1x64xf32> to vector<8x64xf32>
    %116 = arith.addf %113, %115 : vector<8x64xf32>
    %117 = arith.negf %116 : vector<8x64xf32>
    %118 = math.exp %117 : vector<8x64xf32>
    %cst_60 = arith.constant 1.000000e+00 : f32
    %119 = vector.broadcast %cst_60 : f32 to vector<8x64xf32>
    %120 = arith.addf %119, %118 : vector<8x64xf32>
    %121 = arith.divf %119, %120 : vector<8x64xf32>
    %122 = arith.mulf %116, %121 : vector<8x64xf32>
    %c0_61 = arith.constant 0 : index
    %c0_62 = arith.constant 0 : index
    %123 = vector.load %arg18[%c0_61, %c0_62] : memref<8x64xf32, #tpu.memory_space<vmem>>, vector<8x64xf32>
    tpu.vector_store %arg18[%c0_61, %c0_62], %122 {strides = array<i32>} : memref<8x64xf32, #tpu.memory_space<vmem>>, vector<8x64xf32>,
    return
  }
  func.func @transform_0(%arg0: i32) -> (i32, i32) {
    %c0_i32 = arith.constant 0 : i32
    %c0_i32_0 = arith.constant 0 : i32
    return %arg0, %c0_i32 : i32, i32
  }
  func.func @transform_1(%arg0: i32) -> (i32, i32) {
    %c0_i32 = arith.constant 0 : i32
    %c0_i32_0 = arith.constant 0 : i32
    %c0_i32_1 = arith.constant 0 : i32
    return %c0_i32, %c0_i32_0 : i32, i32
  }
  func.func @transform_2(%arg0: i32) -> (i32, i32) {
    %c0_i32 = arith.constant 0 : i32
    %c0_i32_0 = arith.constant 0 : i32
    %c0_i32_1 = arith.constant 0 : i32
    return %c0_i32, %c0_i32_0 : i32, i32
  }
  func.func @transform_3(%arg0: i32) -> (i32, i32) {
    %c0_i32 = arith.constant 0 : i32
    %c0_i32_0 = arith.constant 0 : i32
    %c0_i32_1 = arith.constant 0 : i32
    return %c0_i32, %c0_i32_0 : i32, i32
  }
  func.func @transform_4(%arg0: i32) -> (i32, i32) {
    %c0_i32 = arith.constant 0 : i32
    %c0_i32_0 = arith.constant 0 : i32
    %c0_i32_1 = arith.constant 0 : i32
    return %c0_i32, %c0_i32_0 : i32, i32
  }
  func.func @transform_5(%arg0: i32) -> (i32, i32) {
    %c0_i32 = arith.constant 0 : i32
    %c0_i32_0 = arith.constant 0 : i32
    %c0_i32_1 = arith.constant 0 : i32
    return %c0_i32, %c0_i32_0 : i32, i32
  }
  func.func @transform_6(%arg0: i32) -> (i32, i32) {
    %c0_i32 = arith.constant 0 : i32
    %c0_i32_0 = arith.constant 0 : i32
    %c0_i32_1 = arith.constant 0 : i32
    return %c0_i32, %c0_i32_0 : i32, i32
  }
  func.func @transform_7(%arg0: i32) -> (i32, i32) {
    %c0_i32 = arith.constant 0 : i32
    %c0_i32_0 = arith.constant 0 : i32
    %c0_i32_1 = arith.constant 0 : i32
    return %c0_i32, %c0_i32_0 : i32, i32
  }
  func.func @transform_8(%arg0: i32) -> (i32, i32) {
    %c0_i32 = arith.constant 0 : i32
    %c0_i32_0 = arith.constant 0 : i32
    %c0_i32_1 = arith.constant 0 : i32
    return %c0_i32, %c0_i32_0 : i32, i32
  }
  func.func @transform_9(%arg0: i32) -> (i32, i32) {
    %c0_i32 = arith.constant 0 : i32
    %c0_i32_0 = arith.constant 0 : i32
    %c0_i32_1 = arith.constant 0 : i32
    return %c0_i32, %c0_i32_0 : i32, i32
  }
  func.func @transform_10(%arg0: i32) -> (i32, i32) {
    %c0_i32 = arith.constant 0 : i32
    %c0_i32_0 = arith.constant 0 : i32
    %c0_i32_1 = arith.constant 0 : i32
    return %c0_i32, %c0_i32_0 : i32, i32
  }
  func.func @transform_11(%arg0: i32) -> (i32, i32) {
    %c0_i32 = arith.constant 0 : i32
    %c0_i32_0 = arith.constant 0 : i32
    %c0_i32_1 = arith.constant 0 : i32
    return %c0_i32, %c0_i32_0 : i32, i32
  }
  func.func @transform_12(%arg0: i32) -> (i32, i32) {
    %c0_i32 = arith.constant 0 : i32
    %c0_i32_0 = arith.constant 0 : i32
    %c0_i32_1 = arith.constant 0 : i32
    return %c0_i32, %c0_i32_0 : i32, i32
  }
  func.func @transform_13(%arg0: i32) -> (i32, i32) {
    %c0_i32 = arith.constant 0 : i32
    %c0_i32_0 = arith.constant 0 : i32
    %c0_i32_1 = arith.constant 0 : i32
    return %c0_i32, %c0_i32_0 : i32, i32
  }
  func.func @transform_14(%arg0: i32) -> (i32, i32) {
    %c0_i32 = arith.constant 0 : i32
    %c0_i32_0 = arith.constant 0 : i32
    %c0_i32_1 = arith.constant 0 : i32
    return %c0_i32, %c0_i32_0 : i32, i32
  }
  func.func @transform_15(%arg0: i32) -> (i32, i32) {
    %c0_i32 = arith.constant 0 : i32
    %c0_i32_0 = arith.constant 0 : i32
    %c0_i32_1 = arith.constant 0 : i32
    return %c0_i32, %c0_i32_0 : i32, i32
  }
  func.func @transform_16(%arg0: i32) -> (i32, i32) {
    %c0_i32 = arith.constant 0 : i32
    %c0_i32_0 = arith.constant 0 : i32
    %c0_i32_1 = arith.constant 0 : i32
    return %c0_i32, %c0_i32_0 : i32, i32
  }
  func.func @transform_17(%arg0: i32) -> (i32, i32) {
    %c0_i32 = arith.constant 0 : i32
    %c0_i32_0 = arith.constant 0 : i32
    return %arg0, %c0_i32 : i32, i32
  }
}

</mosaic_0001>

<llo_original>
// kernel: bottom_model.1
$region0: #{bottom_model.1}
  #allocation0 [shape = 'u32[]', space=smem, size = 0x4, offset = 0x4, fixed_abs, tag = 'smem constant byte address 0x4 - core index']
  #allocation1 [shape = 'u32[144,128]{1,0:T(1,128)}', space=vmem, size = 0x12000, scoped, tag = 'internal scratch']
  %s0 = inlined_call_operand.vmem [shape: f32[8,24], index: 0, kind: input, shape index: {}]
  %s1 = inlined_call_operand.vmem [shape: bf16[24,260], index: 1, kind: input, shape index: {}]
  %s2 = inlined_call_operand.vmem [shape: f32[1,260], index: 2, kind: input, shape index: {}]
  %s3 = inlined_call_operand.vmem [shape: f32[1,256], index: 3, kind: input, shape index: {}]
  %s4 = inlined_call_operand.vmem [shape: f32[1,256], index: 4, kind: input, shape index: {}]
  %s5 = inlined_call_operand.vmem [shape: bf16[256,4], index: 5, kind: input, shape index: {}]
  %s6 = inlined_call_operand.vmem [shape: bf16[4,256], index: 6, kind: input, shape index: {}]
  %s7 = inlined_call_operand.vmem [shape: bf16[256,132], index: 7, kind: input, shape index: {}]
  %s8 = inlined_call_operand.vmem [shape: f32[1,132], index: 8, kind: input, shape index: {}]
  %s9 = inlined_call_operand.vmem [shape: f32[1,128], index: 9, kind: input, shape index: {}]
  %s10 = inlined_call_operand.vmem [shape: f32[1,128], index: 10, kind: input, shape index: {}]
  %s11 = inlined_call_operand.vmem [shape: bf16[128,4], index: 11, kind: input, shape index: {}]
  %s12 = inlined_call_operand.vmem [shape: bf16[4,128], index: 12, kind: input, shape index: {}]
  %s13 = inlined_call_operand.vmem [shape: bf16[128,64], index: 13, kind: input, shape index: {}]
  %s14 = inlined_call_operand.vmem [shape: f32[1,64], index: 14, kind: input, shape index: {}]
  %s15 = inlined_call_operand.vmem [shape: f32[1,64], index: 15, kind: input, shape index: {}]
  %s16 = inlined_call_operand.vmem [shape: f32[1,64], index: 16, kind: input, shape index: {}]
  %s17 = inlined_call_operand.hbm [shape: f32[8,64], index: 17, kind: output, shape index: {}]
  %s18 = sld [smem:[#allocation0]]
  $region78: #{bottom_model.1} parent=0
    _
  %s20 = ssub.s32 1, %s18
  %s21 = scalar_select 0, %s20, %s18
  $region1: #{bottom_model.1} parent=0
    #allocation2 [shape = 'u8[4096]{0}', space=vmem, size = 0x1000, scoped, tag = 'output window, operand 0, single buffered']
    #allocation3 [shape = 's32[1]{0}', space=sflag, size = 0x4, scoped, tag = 'scoped memory for bottom_model.1']
    %22 = vsyncpa [#allocation3], 0
    // Predicated region
    $region2: #{bottom_model.1} parent=1 // pred_check
      _
    $region3: #{bottom_model.1} parent=1 // pred_check_branch
      %24 = sbr.rel (0) target = $region5
    $region4: #{bottom_model.1} parent=1 // pred_region
      _
    $region5: #{bottom_model.1} parent=1 // pred_fallthru
      _
    // Predicated region
    $region6: #{bottom_model.1} parent=1 // pred_check
      _
    $region7: #{bottom_model.1} parent=1 // pred_check_branch
      %26 = sbr.rel (0) target = $region9
    $region8: #{bottom_model.1} parent=1 // pred_region
      _
    $region9: #{bottom_model.1} parent=1 // pred_fallthru
      _
    // Predicated region
    $region10: #{bottom_model.1} parent=1 // pred_check
      _
    $region11: #{bottom_model.1} parent=1 // pred_check_branch
      %28 = sbr.rel (0) target = $region13
    $region12: #{bottom_model.1} parent=1 // pred_region
      _
    $region13: #{bottom_model.1} parent=1 // pred_fallthru
      _
    // Predicated region
    $region14: #{bottom_model.1} parent=1 // pred_check
      _
    $region15: #{bottom_model.1} parent=1 // pred_check_branch
      %30 = sbr.rel (0) target = $region17
    $region16: #{bottom_model.1} parent=1 // pred_region
      _
    $region17: #{bottom_model.1} parent=1 // pred_fallthru
      _
    // Predicated region
    $region18: #{bottom_model.1} parent=1 // pred_check
      _
    $region19: #{bottom_model.1} parent=1 // pred_check_branch
      %32 = sbr.rel (0) target = $region21
    $region20: #{bottom_model.1} parent=1 // pred_region
      _
    $region21: #{bottom_model.1} parent=1 // pred_fallthru
      _
    // Predicated region
    $region22: #{bottom_model.1} parent=1 // pred_check
      _
    $region23: #{bottom_model.1} parent=1 // pred_check_branch
      %34 = sbr.rel (0) target = $region25
    $region24: #{bottom_model.1} parent=1 // pred_region
      _
    $region25: #{bottom_model.1} parent=1 // pred_fallthru
      _
    // Predicated region
    $region26: #{bottom_model.1} parent=1 // pred_check
      _
    $region27: #{bottom_model.1} parent=1 // pred_check_branch
      %36 = sbr.rel (0) target = $region29
    $region28: #{bottom_model.1} parent=1 // pred_region
      _
    $region29: #{bottom_model.1} parent=1 // pred_fallthru
      _
    // Predicated region
    $region30: #{bottom_model.1} parent=1 // pred_check
      _
    $region31: #{bottom_model.1} parent=1 // pred_check_branch
      %38 = sbr.rel (0) target = $region33
    $region32: #{bottom_model.1} parent=1 // pred_region
      _
    $region33: #{bottom_model.1} parent=1 // pred_fallthru
      _
    // Predicated region
    $region34: #{bottom_model.1} parent=1 // pred_check
      _
    $region35: #{bottom_model.1} parent=1 // pred_check_branch
      %40 = sbr.rel (0) target = $region37
    $region36: #{bottom_model.1} parent=1 // pred_region
      _
    $region37: #{bottom_model.1} parent=1 // pred_fallthru
      _
    // Predicated region
    $region38: #{bottom_model.1} parent=1 // pred_check
      _
    $region39: #{bottom_model.1} parent=1 // pred_check_branch
      %42 = sbr.rel (0) target = $region41
    $region40: #{bottom_model.1} parent=1 // pred_region
      _
    $region41: #{bottom_model.1} parent=1 // pred_fallthru
      _
    // Predicated region
    $region42: #{bottom_model.1} parent=1 // pred_check
      _
    $region43: #{bottom_model.1} parent=1 // pred_check_branch
      %44 = sbr.rel (0) target = $region45
    $region44: #{bottom_model.1} parent=1 // pred_region
      _
    $region45: #{bottom_model.1} parent=1 // pred_fallthru
      _
    // Predicated region
    $region46: #{bottom_model.1} parent=1 // pred_check
      _
    $region47: #{bottom_model.1} parent=1 // pred_check_branch
      %46 = sbr.rel (0) target = $region49
    $region48: #{bottom_model.1} parent=1 // pred_region
      _
    $region49: #{bottom_model.1} parent=1 // pred_fallthru
      _
    // Predicated region
    $region50: #{bottom_model.1} parent=1 // pred_check
      _
    $region51: #{bottom_model.1} parent=1 // pred_check_branch
      %48 = sbr.rel (0) target = $region53
    $region52: #{bottom_model.1} parent=1 // pred_region
      _
    $region53: #{bottom_model.1} parent=1 // pred_fallthru
      _
    // Predicated region
    $region54: #{bottom_model.1} parent=1 // pred_check
      _
    $region55: #{bottom_model.1} parent=1 // pred_check_branch
      %50 = sbr.rel (0) target = $region57
    $region56: #{bottom_model.1} parent=1 // pred_region
      _
    $region57: #{bottom_model.1} parent=1 // pred_fallthru
      _
    // Predicated region
    $region58: #{bottom_model.1} parent=1 // pred_check
      _
    $region59: #{bottom_model.1} parent=1 // pred_check_branch
      %52 = sbr.rel (0) target = $region61
    $region60: #{bottom_model.1} parent=1 // pred_region
      _
    $region61: #{bottom_model.1} parent=1 // pred_fallthru
      _
    // Predicated region
    $region62: #{bottom_model.1} parent=1 // pred_check
      _
    $region63: #{bottom_model.1} parent=1 // pred_check_branch
      %54 = sbr.rel (0) target = $region65
    $region64: #{bottom_model.1} parent=1 // pred_region
      _
    $region65: #{bottom_model.1} parent=1 // pred_fallthru
      _
    // Predicated region
    $region66: #{bottom_model.1} parent=1 // pred_check
      _
    $region67: #{bottom_model.1} parent=1 // pred_check_branch
      %56 = sbr.rel (0) target = $region69
    $region68: #{bottom_model.1} parent=1 // pred_region
      _
    $region69: #{bottom_model.1} parent=1 // pred_fallthru
      _
    %v59 = vld [vmem:[%s0] sm:$0xff]
    %v60 = vpack.c.bf16 %v59, %v59
    %v61 = vld [vmem:[%s1] sm:$0xff]
    %v62 = vld [vmem:[%s1 + $0x8] sm:$0xf]
    %v63 = vld [vmem:[%s1 + $0xc] sm:$0xff]
    %v64 = vld [vmem:[%s1 + $0x14] sm:$0xf]
    %v65 = vld [vmem:[%s1 + $0x18] sm:$0xff]
    %v66 = vld [vmem:[%s1 + $0x20] sm:$0xf]
    %v67 = vld [vmem:[%s2] sm:$0x7]
    %v69 = vlaneseq
    %v70 = vshrl.u32 %v69, 7
    %v71 = vsub.s32 0, %v70
    %v72 = vrot.slane %v67, %v71
    %v73 = vlaneseq
    %v74 = vshrl.u32 %v73, 7
    %v75 = vsub.s32 1, %v74
    %v76 = vrot.slane %v67, %v75
    %v77 = vlaneseq
    %v78 = vshrl.u32 %v77, 7
    %v79 = vsub.s32 2, %v78
    %v80 = vrot.slane %v67, %v79
    %v90 = vunpack.c.l.b16 %v61
    %v91 = vunpack.c.h.b16 %v61
    %v92 = vunpack.c.l.b16 %v62
    %v93 = vunpack.c.l.b16 %v63
    %v94 = vunpack.c.h.b16 %v63
    %v95 = vunpack.c.l.b16 %v64
    %v96 = vunpack.c.l.b16 %v65
    %v97 = vunpack.c.h.b16 %v65
    %v98 = vunpack.c.l.b16 %v66
    %v99 = vpack.c.b16 %v93, %v90
    %v100 = vpack.c.b16 %v94, %v91
    %v101 = vpack.c.b16 %v95, %v92
    %v102 = vpack.c.b16 %v96, %v96
    %v103 = vpack.c.b16 %v97, %v97
    %v104 = vpack.c.b16 %v98, %v98
    %vm108 = vcmask 195584
    %v110 = vsel %vm108, %v60, 0
    %vm112 = vcmask 1043456
    %v114 = vsel %vm112, %v102, 0
    %v117 = vsel %vm112, %v103, 0
    %v120 = vsel %vm112, %v104, 0
    %122 = vmatprep.subr.bf16.mxu0 0
    %123 = vmatpush1.bf16.msra.mxu0 0
    %124 = vmatprep.subr.bf16.mxu0 0
    %125 = vmatpush1.bf16.msra.mxu0 0
    %126 = vmatprep.subr.bf16.mxu0 0
    %127 = vmatpush1.bf16.msra.mxu0 0
    %128 = vmatprep.subr.bf16.mxu0 0
    %129 = vmatpush1.bf16.msra.mxu0 0
    %130 = vmatprep.subr.bf16.mxu0 0
    %131 = vmatpush1.bf16.msra.mxu0 0
    %132 = vmatprep.subr.bf16.mxu0 0
    %133 = vmatpush1.bf16.msra.mxu0 0
    %134 = vmatprep.subr.bf16.mxu0 %v117
    %135 = vmatpush1.bf16.msra.mxu0 %v114
    %136 = vmatprep.subr.bf16.mxu0 %v100
    %137 = vmatpush1.bf16.msra.mxu0 %v99
    %138 = vmatprep.subr.bf16.mxu0 0
    %139 = vmatpush2.bf16.msra.mxu0 0
    %140 = vmatprep.subr.bf16.mxu0 0
    %141 = vmatpush2.bf16.msra.mxu0 0
    %142 = vmatprep.subr.bf16.mxu0 0
    %143 = vmatpush2.bf16.msra.mxu0 0
    %144 = vmatprep.subr.bf16.mxu0 0
    %145 = vmatpush2.bf16.msra.mxu0 0
    %146 = vmatprep.subr.bf16.mxu0 0
    %147 = vmatpush2.bf16.msra.mxu0 0
    %148 = vmatprep.subr.bf16.mxu0 0
    %149 = vmatpush2.bf16.msra.mxu0 0
    %150 = vmatprep.subr.bf16.mxu0 0
    %151 = vmatpush2.bf16.msra.mxu0 0
    %152 = vmatprep.subr.bf16.mxu0 0
    %153 = vmatpush2.bf16.msra.mxu0 0
    %154 = vmatprep.mubr.bf16.mxu0 0
    %155 = vmatmul.mubr.bf16.gmra.mxu0 %v110
    %v156 = vpop.f32.mrf.mxu0
    %v157 = vadd.f32 %v72, %v156
    %v158 = vpop.f32.mrf.mxu0
    %v159 = vadd.f32 %v76, %v158
    %v160 = vpop.f32.mrf.mxu0
    %v161 = vpop.f32.mrf.mxu0
    %162 = vdwg.mxu0
    %163 = vmatprep.subr.bf16.mxu0 0
    %164 = vmatpush1.bf16.msra.mxu0 0
    %165 = vmatprep.subr.bf16.mxu0 0
    %166 = vmatpush1.bf16.msra.mxu0 0
    %167 = vmatprep.subr.bf16.mxu0 0
    %168 = vmatpush1.bf16.msra.mxu0 0
    %169 = vmatprep.subr.bf16.mxu0 0
    %170 = vmatpush1.bf16.msra.mxu0 0
    %171 = vmatprep.subr.bf16.mxu0 0
    %172 = vmatpush1.bf16.msra.mxu0 0
    %173 = vmatprep.subr.bf16.mxu0 0
    %174 = vmatpush1.bf16.msra.mxu0 0
    %175 = vmatprep.subr.bf16.mxu0 0
    %176 = vmatpush1.bf16.msra.mxu0 %v120
    %177 = vmatprep.subr.bf16.mxu0 0
    %178 = vmatpush1.bf16.msra.mxu0 %v101
    %179 = vmatprep.subr.bf16.mxu0 0
    %180 = vmatpush2.bf16.msra.mxu0 0
    %181 = vmatprep.subr.bf16.mxu0 0
    %182 = vmatpush2.bf16.msra.mxu0 0
    %183 = vmatprep.subr.bf16.mxu0 0
    %184 = vmatpush2.bf16.msra.mxu0 0
    %185 = vmatprep.subr.bf16.mxu0 0
    %186 = vmatpush2.bf16.msra.mxu0 0
    %187 = vmatprep.subr.bf16.mxu0 0
    %188 = vmatpush2.bf16.msra.mxu0 0
    %189 = vmatprep.subr.bf16.mxu0 0
    %190 = vmatpush2.bf16.msra.mxu0 0
    %191 = vmatprep.subr.bf16.mxu0 0
    %192 = vmatpush2.bf16.msra.mxu0 0
    %193 = vmatprep.subr.bf16.mxu0 0
    %194 = vmatpush2.bf16.msra.mxu0 0
    %195 = vmatprep.mubr.bf16.mxu0 0
    %196 = vmatmul.mubr.bf16.gmra.mxu0 %v110
    %v197 = vpop.f32.mrf.mxu0
    %v198 = vadd.f32 %v80, %v197
    %v199 = vpop.f32.mrf.mxu0
    %v200 = vpop.f32.mrf.mxu0
    %v201 = vpop.f32.mrf.mxu0
    %202 = vdwg.mxu0
    %v203 = vld [vmem:[%s5] sm:$0xf]
    %v204 = vld [vmem:[%s5 + $0x4] sm:$0xf]
    %v205 = vld [vmem:[%s5 + $0x8] sm:$0xf]
    %v206 = vld [vmem:[%s5 + $0xc] sm:$0xf]
    %v207 = vld [vmem:[%s5 + $0x10] sm:$0xf]
    %v208 = vld [vmem:[%s5 + $0x14] sm:$0xf]
    %v209 = vld [vmem:[%s5 + $0x18] sm:$0xf]
    %v210 = vld [vmem:[%s5 + $0x1c] sm:$0xf]
    %v211 = vld [vmem:[%s5 + $0x20] sm:$0xf]
    %v212 = vld [vmem:[%s5 + $0x24] sm:$0xf]
    %v213 = vld [vmem:[%s5 + $0x28] sm:$0xf]
    %v214 = vld [vmem:[%s5 + $0x2c] sm:$0xf]
    %v215 = vld [vmem:[%s5 + $0x30] sm:$0xf]
    %v216 = vld [vmem:[%s5 + $0x34] sm:$0xf]
    %v217 = vld [vmem:[%s5 + $0x38] sm:$0xf]
    %v218 = vld [vmem:[%s5 + $0x3c] sm:$0xf]
    %v219 = vld [vmem:[%s5 + $0x40] sm:$0xf]
    %v220 = vld [vmem:[%s5 + $0x44] sm:$0xf]
    %v221 = vld [vmem:[%s5 + $0x48] sm:$0xf]
    %v222 = vld [vmem:[%s5 + $0x4c] sm:$0xf]
    %v223 = vld [vmem:[%s5 + $0x50] sm:$0xf]
    %v224 = vld [vmem:[%s5 + $0x54] sm:$0xf]
    %v225 = vld [vmem:[%s5 + $0x58] sm:$0xf]
    %v226 = vld [vmem:[%s5 + $0x5c] sm:$0xf]
    %v227 = vld [vmem:[%s5 + $0x60] sm:$0xf]
    %v228 = vld [vmem:[%s5 + $0x64] sm:$0xf]
    %v229 = vld [vmem:[%s5 + $0x68] sm:$0xf]
    %v230 = vld [vmem:[%s5 + $0x6c] sm:$0xf]
    %v231 = vld [vmem:[%s5 + $0x70] sm:$0xf]
    %v232 = vld [vmem:[%s5 + $0x74] sm:$0xf]
    %v233 = vld [vmem:[%s5 + $0x78] sm:$0xf]
    %v234 = vld [vmem:[%s5 + $0x7c] sm:$0xf]
    %v235 = vld [vmem:[%s6] sm:$0xf]
    %v236 = vld [vmem:[%s3] sm:$0x3]
    %v237 = vld [vmem:[%s4] sm:$0x3]
    %v238 = vpack.c.bf16 %v157, %v157
    %v239 = vpack.c.bf16 %v159, %v159
    %v240 = vmul.bf16 %v238, %v238
    %v241 = vmul.bf16 %v239, %v239
    %v274 = vunpack.c.l.b16 %v203
    %v275 = vunpack.c.l.b16 %v204
    %v276 = vunpack.c.l.b16 %v205
    %v277 = vunpack.c.l.b16 %v206
    %v278 = vunpack.c.l.b16 %v207
    %v279 = vunpack.c.l.b16 %v208
    %v280 = vunpack.c.l.b16 %v209
    %v281 = vunpack.c.l.b16 %v210
    %v282 = vunpack.c.l.b16 %v211
    %v283 = vunpack.c.l.b16 %v212
    %v284 = vunpack.c.l.b16 %v213
    %v285 = vunpack.c.l.b16 %v214
    %v286 = vunpack.c.l.b16 %v215
    %v287 = vunpack.c.l.b16 %v216
    %v288 = vunpack.c.l.b16 %v217
    %v289 = vunpack.c.l.b16 %v218
    %v290 = vunpack.c.l.b16 %v219
    %v291 = vunpack.c.l.b16 %v220
    %v292 = vunpack.c.l.b16 %v221
    %v293 = vunpack.c.l.b16 %v222
    %v294 = vunpack.c.l.b16 %v223
    %v295 = vunpack.c.l.b16 %v224
    %v296 = vunpack.c.l.b16 %v225
    %v297 = vunpack.c.l.b16 %v226
    %v298 = vunpack.c.l.b16 %v227
    %v299 = vunpack.c.l.b16 %v228
    %v300 = vunpack.c.l.b16 %v229
    %v301 = vunpack.c.l.b16 %v230
    %v302 = vunpack.c.l.b16 %v231
    %v303 = vunpack.c.l.b16 %v232
    %v304 = vunpack.c.l.b16 %v233
    %v305 = vunpack.c.l.b16 %v234
    %v306 = vpack.c.b16 %v275, %v274
    %v307 = vpack.c.b16 %v277, %v276
    %v308 = vpack.c.b16 %v279, %v278
    %v309 = vpack.c.b16 %v281, %v280
    %v310 = vpack.c.b16 %v283, %v282
    %v311 = vpack.c.b16 %v285, %v284
    %v312 = vpack.c.b16 %v287, %v286
    %v313 = vpack.c.b16 %v289, %v288
    %v314 = vpack.c.b16 %v291, %v290
    %v315 = vpack.c.b16 %v293, %v292
    %v316 = vpack.c.b16 %v295, %v294
    %v317 = vpack.c.b16 %v297, %v296
    %v318 = vpack.c.b16 %v299, %v298
    %v319 = vpack.c.b16 %v301, %v300
    %v320 = vpack.c.b16 %v303, %v302
    %v321 = vpack.c.b16 %v305, %v304
    %338 = vmatprep.subr.bf16.mxu0 0
    %339 = vmatpush1.bf16.msra.mxu0 %v313
    %340 = vmatprep.subr.bf16.mxu0 0
    %341 = vmatpush1.bf16.msra.mxu0 %v312
    %342 = vmatprep.subr.bf16.mxu0 0
    %343 = vmatpush1.bf16.msra.mxu0 %v311
    %344 = vmatprep.subr.bf16.mxu0 0
    %345 = vmatpush1.bf16.msra.mxu0 %v310
    %346 = vmatprep.subr.bf16.mxu0 0
    %347 = vmatpush1.bf16.msra.mxu0 %v309
    %348 = vmatprep.subr.bf16.mxu0 0
    %349 = vmatpush1.bf16.msra.mxu0 %v308
    %350 = vmatprep.subr.bf16.mxu0 0
    %351 = vmatpush1.bf16.msra.mxu0 %v307
    %352 = vmatprep.subr.bf16.mxu0 0
    %353 = vmatpush1.bf16.msra.mxu0 %v306
    %354 = vmatprep.subr.bf16.mxu0 0
    %355 = vmatpush2.bf16.msra.mxu0 %v321
    %356 = vmatprep.subr.bf16.mxu0 0
    %357 = vmatpush2.bf16.msra.mxu0 %v320
    %358 = vmatprep.subr.bf16.mxu0 0
    %359 = vmatpush2.bf16.msra.mxu0 %v319
    %360 = vmatprep.subr.bf16.mxu0 0
    %361 = vmatpush2.bf16.msra.mxu0 %v318
    %362 = vmatprep.subr.bf16.mxu0 0
    %363 = vmatpush2.bf16.msra.mxu0 %v317
    %364 = vmatprep.subr.bf16.mxu0 0
    %365 = vmatpush2.bf16.msra.mxu0 %v316
    %366 = vmatprep.subr.bf16.mxu0 0
    %367 = vmatpush2.bf16.msra.mxu0 %v315
    %368 = vmatprep.subr.bf16.mxu0 0
    %369 = vmatpush2.bf16.msra.mxu0 %v314
    %370 = vmatprep.mubr.bf16.mxu0 %v241
    %371 = vmatmul.mubr.bf16.gmra.mxu0 %v240
    %v372 = vpop.f32.mrf.mxu0
    %v373 = vadd.f32 0.0, %v372
    %v374 = vpop.f32.mrf.mxu0
    %v375 = vpop.f32.mrf.mxu0
    %v376 = vpop.f32.mrf.mxu0
    %377 = vdwg.mxu0
    %v378 = vmul.f32 %v198, 0.015625
    %v379 = vmul.f32 %v373, 0.015625
    %v380 = vmul.f32 %v378, %v378
    %v381 = vsub.f32 %v379, %v380
    %v382 = vmax.f32 %v381, 0.0
    %v383 = vadd.f32 %v382, 1e-05
    %v384 = vrsqrt.pop %v383
    %v385 = vpack.c.bf16 %v378, %v378
    %v388 = vunpack.c.l.s4 1983009808
    %v389 = vunpack.c.0.s8 %v388
    %v390 = vlaneseq
    %v391 = vshrl.u32 %v390, 7
    %v392 = vsub.s32 %v389, %v391
    %v393 = vrot.slane %v235, %v392
    %v394 = vcombine.high %v393, %v393
    %vm395 = vcmask 31744
    %v397 = vsel %vm395, %v385, 0
    %vm399 = vcmask 1041408
    %v401 = vsel %vm399, %v393, 0
    %v404 = vsel %vm399, %v394, 0
    %406 = vmatprep.subr.bf16.mxu0 0
    %407 = vmatpush1.bf16.msra.mxu0 0
    %408 = vmatprep.subr.bf16.mxu0 0
    %409 = vmatpush1.bf16.msra.mxu0 0
    %410 = vmatprep.subr.bf16.mxu0 0
    %411 = vmatpush1.bf16.msra.mxu0 0
    %412 = vmatprep.subr.bf16.mxu0 0
    %413 = vmatpush1.bf16.msra.mxu0 0
    %414 = vmatprep.subr.bf16.mxu0 0
    %415 = vmatpush1.bf16.msra.mxu0 0
    %416 = vmatprep.subr.bf16.mxu0 0
    %417 = vmatpush1.bf16.msra.mxu0 0
    %418 = vmatprep.subr.bf16.mxu0 0
    %419 = vmatpush1.bf16.msra.mxu0 0
    %420 = vmatprep.subr.bf16.mxu0 %v404
    %421 = vmatpush1.bf16.msra.mxu0 %v401
    %422 = vmatprep.subr.bf16.mxu0 0
    %423 = vmatpush2.bf16.msra.mxu0 0
    %424 = vmatprep.subr.bf16.mxu0 0
    %425 = vmatpush2.bf16.msra.mxu0 0
    %426 = vmatprep.subr.bf16.mxu0 0
    %427 = vmatpush2.bf16.msra.mxu0 0
    %428 = vmatprep.subr.bf16.mxu0 0
    %429 = vmatpush2.bf16.msra.mxu0 0
    %430 = vmatprep.subr.bf16.mxu0 0
    %431 = vmatpush2.bf16.msra.mxu0 0
    %432 = vmatprep.subr.bf16.mxu0 0
    %433 = vmatpush2.bf16.msra.mxu0 0
    %434 = vmatprep.subr.bf16.mxu0 0
    %435 = vmatpush2.bf16.msra.mxu0 0
    %436 = vmatprep.subr.bf16.mxu0 0
    %437 = vmatpush2.bf16.msra.mxu0 0
    %438 = vmatprep.mubr.bf16.mxu0 0
    %439 = vmatmul.mubr.bf16.gmra.mxu0 %v397
    %v440 = vpop.f32.mrf.mxu0
    %v441 = vadd.f32 0.0, %v440
    %v442 = vpop.f32.mrf.mxu0
    %v443 = vadd.f32 0.0, %v442
    %v444 = vpop.f32.mrf.mxu0
    %v445 = vpop.f32.mrf.mxu0
    %446 = vdwg.mxu0
    %v447 = vpack.c.bf16 %v384, %v384
    %v449 = vsel %vm395, %v447, 0
    %451 = vmatprep.subr.bf16.mxu0 0
    %452 = vmatpush1.bf16.msra.mxu0 0
    %453 = vmatprep.subr.bf16.mxu0 0
    %454 = vmatpush1.bf16.msra.mxu0 0
    %455 = vmatprep.subr.bf16.mxu0 0
    %456 = vmatpush1.bf16.msra.mxu0 0
    %457 = vmatprep.subr.bf16.mxu0 0
    %458 = vmatpush1.bf16.msra.mxu0 0
    %459 = vmatprep.subr.bf16.mxu0 0
    %460 = vmatpush1.bf16.msra.mxu0 0
    %461 = vmatprep.subr.bf16.mxu0 0
    %462 = vmatpush1.bf16.msra.mxu0 0
    %463 = vmatprep.subr.bf16.mxu0 0
    %464 = vmatpush1.bf16.msra.mxu0 0
    %465 = vmatprep.subr.bf16.mxu0 %v404
    %466 = vmatpush1.bf16.msra.mxu0 %v401
    %467 = vmatprep.subr.bf16.mxu0 0
    %468 = vmatpush2.bf16.msra.mxu0 0
    %469 = vmatprep.subr.bf16.mxu0 0
    %470 = vmatpush2.bf16.msra.mxu0 0
    %471 = vmatprep.subr.bf16.mxu0 0
    %472 = vmatpush2.bf16.msra.mxu0 0
    %473 = vmatprep.subr.bf16.mxu0 0
    %474 = vmatpush2.bf16.msra.mxu0 0
    %475 = vmatprep.subr.bf16.mxu0 0
    %476 = vmatpush2.bf16.msra.mxu0 0
    %477 = vmatprep.subr.bf16.mxu0 0
    %478 = vmatpush2.bf16.msra.mxu0 0
    %479 = vmatprep.subr.bf16.mxu0 0
    %480 = vmatpush2.bf16.msra.mxu0 0
    %481 = vmatprep.subr.bf16.mxu0 0
    %482 = vmatpush2.bf16.msra.mxu0 0
    %483 = vmatprep.mubr.bf16.mxu0 0
    %484 = vmatmul.mubr.bf16.gmra.mxu0 %v449
    %v485 = vpop.f32.mrf.mxu0
    %v486 = vadd.f32 0.0, %v485
    %v487 = vpop.f32.mrf.mxu0
    %v488 = vadd.f32 0.0, %v487
    %v489 = vpop.f32.mrf.mxu0
    %v490 = vpop.f32.mrf.mxu0
    %491 = vdwg.mxu0
    %v492 = vsub.f32 %v157, %v441
    %v493 = vsub.f32 %v159, %v443
    %v494 = vmul.f32 %v492, %v486
    %v495 = vmul.f32 %v493, %v488
    %v497 = vlaneseq
    %v498 = vshrl.u32 %v497, 7
    %v499 = vsub.s32 0, %v498
    %v500 = vrot.slane %v236, %v499
    %v501 = vlaneseq
    %v502 = vshrl.u32 %v501, 7
    %v503 = vsub.s32 1, %v502
    %v504 = vrot.slane %v236, %v503
    %v507 = vmul.f32 %v494, %v500
    %v508 = vmul.f32 %v495, %v504
    %v510 = vlaneseq
    %v511 = vshrl.u32 %v510, 7
    %v512 = vsub.s32 0, %v511
    %v513 = vrot.slane %v237, %v512
    %v514 = vlaneseq
    %v515 = vshrl.u32 %v514, 7
    %v516 = vsub.s32 1, %v515
    %v517 = vrot.slane %v237, %v516
    %v520 = vadd.f32 %v507, %v513
    %v521 = vadd.f32 %v508, %v517
    %v522 = vpack.c.bf16 %v520, %v520
    %v523 = vpack.c.bf16 %v521, %v521
    %vm524 = vcmp.gt.bf16.partialorder %v522, 0
    %vm525 = vcmp.gt.bf16.partialorder %v523, 0
    %v526 = vmin.bf16 %v522, 0
    %v527 = vmin.bf16 %v523, 0
    %v529 = vmul.bf16 %v526, 1069105081
    %v530 = vpow.bf16.pop %v529
    %v532 = vmul.bf16 %v527, 1069105081
    %v533 = vpow.bf16.pop %v532
    %v534 = vsub.bf16 %v530, 1065369472
    %v535 = vsub.bf16 %v533, 1065369472
    %v536 = vsel %vm524, %v522, %v534
    %v537 = vsel %vm525, %v523, %v535
    %v538 = vld [vmem:[%s7] sm:$0xff]
    %v539 = vld [vmem:[%s7 + $0x8] sm:$0xff]
    %v540 = vld [vmem:[%s7 + $0x10] sm:$0xff]
    %v541 = vld [vmem:[%s7 + $0x18] sm:$0xff]
    %v542 = vld [vmem:[%s7 + $0x20] sm:$0xff]
    %v543 = vld [vmem:[%s7 + $0x28] sm:$0xff]
    %v544 = vld [vmem:[%s7 + $0x30] sm:$0xff]
    %v545 = vld [vmem:[%s7 + $0x38] sm:$0xff]
    %v546 = vld [vmem:[%s7 + $0x40] sm:$0xff]
    %v547 = vld [vmem:[%s7 + $0x48] sm:$0xff]
    %v548 = vld [vmem:[%s7 + $0x50] sm:$0xff]
    %v549 = vld [vmem:[%s7 + $0x58] sm:$0xff]
    %v550 = vld [vmem:[%s7 + $0x60] sm:$0xff]
    %v551 = vld [vmem:[%s7 + $0x68] sm:$0xff]
    %v552 = vld [vmem:[%s7 + $0x70] sm:$0xff]
    %v553 = vld [vmem:[%s7 + $0x78] sm:$0xff]
    %v554 = vld [vmem:[%s7 + $0x80] sm:$0xff]
    %v555 = vld [vmem:[%s7 + $0x88] sm:$0xff]
    %v556 = vld [vmem:[%s7 + $0x90] sm:$0xff]
    %v557 = vld [vmem:[%s7 + $0x98] sm:$0xff]
    %v558 = vld [vmem:[%s7 + $0xa0] sm:$0xff]
    %v559 = vld [vmem:[%s7 + $0xa8] sm:$0xff]
    %v560 = vld [vmem:[%s7 + $0xb0] sm:$0xff]
    %v561 = vld [vmem:[%s7 + $0xb8] sm:$0xff]
    %v562 = vld [vmem:[%s7 + $0xc0] sm:$0xff]
    %v563 = vld [vmem:[%s7 + $0xc8] sm:$0xff]
    %v564 = vld [vmem:[%s7 + $0xd0] sm:$0xff]
    %v565 = vld [vmem:[%s7 + $0xd8] sm:$0xff]
    %v566 = vld [vmem:[%s7 + $0xe0] sm:$0xff]
    %v567 = vld [vmem:[%s7 + $0xe8] sm:$0xff]
    %v568 = vld [vmem:[%s7 + $0xf0] sm:$0xff]
    %v569 = vld [vmem:[%s7 + $0xf8] sm:$0xff]
    %v570 = vld [vmem:[%s8] sm:$0x3]
    %v572 = vlaneseq
    %v573 = vshrl.u32 %v572, 7
    %v574 = vsub.s32 0, %v573
    %v575 = vrot.slane %v570, %v574
    %v576 = vlaneseq
    %v577 = vshrl.u32 %v576, 7
    %v578 = vsub.s32 1, %v577
    %v579 = vrot.slane %v570, %v578
    %v614 = vunpack.c.l.b16 %v538
    %v615 = vunpack.c.h.b16 %v538
    %v616 = vunpack.c.l.b16 %v539
    %v617 = vunpack.c.h.b16 %v539
    %v618 = vunpack.c.l.b16 %v540
    %v619 = vunpack.c.h.b16 %v540
    %v620 = vunpack.c.l.b16 %v541
    %v621 = vunpack.c.h.b16 %v541
    %v622 = vunpack.c.l.b16 %v542
    %v623 = vunpack.c.h.b16 %v542
    %v624 = vunpack.c.l.b16 %v543
    %v625 = vunpack.c.h.b16 %v543
    %v626 = vunpack.c.l.b16 %v544
    %v627 = vunpack.c.h.b16 %v544
    %v628 = vunpack.c.l.b16 %v545
    %v629 = vunpack.c.h.b16 %v545
    %v630 = vunpack.c.l.b16 %v546
    %v631 = vunpack.c.h.b16 %v546
    %v632 = vunpack.c.l.b16 %v547
    %v633 = vunpack.c.h.b16 %v547
    %v634 = vunpack.c.l.b16 %v548
    %v635 = vunpack.c.h.b16 %v548
    %v636 = vunpack.c.l.b16 %v549
    %v637 = vunpack.c.h.b16 %v549
    %v638 = vunpack.c.l.b16 %v550
    %v639 = vunpack.c.h.b16 %v550
    %v640 = vunpack.c.l.b16 %v551
    %v641 = vunpack.c.h.b16 %v551
    %v642 = vunpack.c.l.b16 %v552
    %v643 = vunpack.c.h.b16 %v552
    %v644 = vunpack.c.l.b16 %v553
    %v645 = vunpack.c.h.b16 %v553
    %v646 = vunpack.c.l.b16 %v554
    %v647 = vunpack.c.h.b16 %v554
    %v648 = vunpack.c.l.b16 %v555
    %v649 = vunpack.c.h.b16 %v555
    %v650 = vunpack.c.l.b16 %v556
    %v651 = vunpack.c.h.b16 %v556
    %v652 = vunpack.c.l.b16 %v557
    %v653 = vunpack.c.h.b16 %v557
    %v654 = vunpack.c.l.b16 %v558
    %v655 = vunpack.c.h.b16 %v558
    %v656 = vunpack.c.l.b16 %v559
    %v657 = vunpack.c.h.b16 %v559
    %v658 = vunpack.c.l.b16 %v560
    %v659 = vunpack.c.h.b16 %v560
    %v660 = vunpack.c.l.b16 %v561
    %v661 = vunpack.c.h.b16 %v561
    %v662 = vunpack.c.l.b16 %v562
    %v663 = vunpack.c.h.b16 %v562
    %v664 = vunpack.c.l.b16 %v563
    %v665 = vunpack.c.h.b16 %v563
    %v666 = vunpack.c.l.b16 %v564
    %v667 = vunpack.c.h.b16 %v564
    %v668 = vunpack.c.l.b16 %v565
    %v669 = vunpack.c.h.b16 %v565
    %v670 = vunpack.c.l.b16 %v566
    %v671 = vunpack.c.h.b16 %v566
    %v672 = vunpack.c.l.b16 %v567
    %v673 = vunpack.c.h.b16 %v567
    %v674 = vunpack.c.l.b16 %v568
    %v675 = vunpack.c.h.b16 %v568
    %v676 = vunpack.c.l.b16 %v569
    %v677 = vunpack.c.h.b16 %v569
    %v678 = vpack.c.b16 %v616, %v614
    %v679 = vpack.c.b16 %v617, %v615
    %v680 = vpack.c.b16 %v620, %v618
    %v681 = vpack.c.b16 %v621, %v619
    %v682 = vpack.c.b16 %v624, %v622
    %v683 = vpack.c.b16 %v625, %v623
    %v684 = vpack.c.b16 %v628, %v626
    %v685 = vpack.c.b16 %v629, %v627
    %v686 = vpack.c.b16 %v632, %v630
    %v687 = vpack.c.b16 %v633, %v631
    %v688 = vpack.c.b16 %v636, %v634
    %v689 = vpack.c.b16 %v637, %v635
    %v690 = vpack.c.b16 %v640, %v638
    %v691 = vpack.c.b16 %v641, %v639
    %v692 = vpack.c.b16 %v644, %v642
    %v693 = vpack.c.b16 %v645, %v643
    %v694 = vpack.c.b16 %v648, %v646
    %v695 = vpack.c.b16 %v649, %v647
    %v696 = vpack.c.b16 %v652, %v650
    %v697 = vpack.c.b16 %v653, %v651
    %v698 = vpack.c.b16 %v656, %v654
    %v699 = vpack.c.b16 %v657, %v655
    %v700 = vpack.c.b16 %v660, %v658
    %v701 = vpack.c.b16 %v661, %v659
    %v702 = vpack.c.b16 %v664, %v662
    %v703 = vpack.c.b16 %v665, %v663
    %v704 = vpack.c.b16 %v668, %v666
    %v705 = vpack.c.b16 %v669, %v667
    %v706 = vpack.c.b16 %v672, %v670
    %v707 = vpack.c.b16 %v673, %v671
    %v708 = vpack.c.b16 %v676, %v674
    %v709 = vpack.c.b16 %v677, %v675
    %742 = vmatprep.subr.bf16.mxu0 %v693
    %743 = vmatpush1.bf16.msra.mxu0 %v692
    %744 = vmatprep.subr.bf16.mxu0 %v691
    %745 = vmatpush1.bf16.msra.mxu0 %v690
    %746 = vmatprep.subr.bf16.mxu0 %v689
    %747 = vmatpush1.bf16.msra.mxu0 %v688
    %748 = vmatprep.subr.bf16.mxu0 %v687
    %749 = vmatpush1.bf16.msra.mxu0 %v686
    %750 = vmatprep.subr.bf16.mxu0 %v685
    %751 = vmatpush1.bf16.msra.mxu0 %v684
    %752 = vmatprep.subr.bf16.mxu0 %v683
    %753 = vmatpush1.bf16.msra.mxu0 %v682
    %754 = vmatprep.subr.bf16.mxu0 %v681
    %755 = vmatpush1.bf16.msra.mxu0 %v680
    %756 = vmatprep.subr.bf16.mxu0 %v679
    %757 = vmatpush1.bf16.msra.mxu0 %v678
    %758 = vmatprep.subr.bf16.mxu0 %v709
    %759 = vmatpush2.bf16.msra.mxu0 %v708
    %760 = vmatprep.subr.bf16.mxu0 %v707
    %761 = vmatpush2.bf16.msra.mxu0 %v706
    %762 = vmatprep.subr.bf16.mxu0 %v705
    %763 = vmatpush2.bf16.msra.mxu0 %v704
    %764 = vmatprep.subr.bf16.mxu0 %v703
    %765 = vmatpush2.bf16.msra.mxu0 %v702
    %766 = vmatprep.subr.bf16.mxu0 %v701
    %767 = vmatpush2.bf16.msra.mxu0 %v700
    %768 = vmatprep.subr.bf16.mxu0 %v699
    %769 = vmatpush2.bf16.msra.mxu0 %v698
    %770 = vmatprep.subr.bf16.mxu0 %v697
    %771 = vmatpush2.bf16.msra.mxu0 %v696
    %772 = vmatprep.subr.bf16.mxu0 %v695
    %773 = vmatpush2.bf16.msra.mxu0 %v694
    %774 = vmatprep.mubr.bf16.mxu0 %v537
    %775 = vmatmul.mubr.bf16.gmra.mxu0 %v536
    %v776 = vpop.f32.mrf.mxu0
    %v777 = vadd.f32 %v575, %v776
    %v778 = vpop.f32.mrf.mxu0
    %v779 = vadd.f32 %v579, %v778
    %v780 = vpop.f32.mrf.mxu0
    %v781 = vpop.f32.mrf.mxu0
    %782 = vdwg.mxu0
    %v783 = vld [vmem:[%s11] sm:$0xf]
    %v784 = vld [vmem:[%s11 + $0x4] sm:$0xf]
    %v785 = vld [vmem:[%s11 + $0x8] sm:$0xf]
    %v786 = vld [vmem:[%s11 + $0xc] sm:$0xf]
    %v787 = vld [vmem:[%s11 + $0x10] sm:$0xf]
    %v788 = vld [vmem:[%s11 + $0x14] sm:$0xf]
    %v789 = vld [vmem:[%s11 + $0x18] sm:$0xf]
    %v790 = vld [vmem:[%s11 + $0x1c] sm:$0xf]
    %v791 = vld [vmem:[%s11 + $0x20] sm:$0xf]
    %v792 = vld [vmem:[%s11 + $0x24] sm:$0xf]
    %v793 = vld [vmem:[%s11 + $0x28] sm:$0xf]
    %v794 = vld [vmem:[%s11 + $0x2c] sm:$0xf]
    %v795 = vld [vmem:[%s11 + $0x30] sm:$0xf]
    %v796 = vld [vmem:[%s11 + $0x34] sm:$0xf]
    %v797 = vld [vmem:[%s11 + $0x38] sm:$0xf]
    %v798 = vld [vmem:[%s11 + $0x3c] sm:$0xf]
    %v799 = vld [vmem:[%s12] sm:$0x3]
    %v800 = vld [vmem:[%s9] sm:$0x1]
    %v801 = vld [vmem:[%s10] sm:$0x1]
    %v802 = vpack.c.bf16 %v777, %v777
    %v803 = vmul.bf16 %v802, %v802
    %v820 = vunpack.c.l.b16 %v783
    %v821 = vunpack.c.l.b16 %v784
    %v822 = vunpack.c.l.b16 %v785
    %v823 = vunpack.c.l.b16 %v786
    %v824 = vunpack.c.l.b16 %v787
    %v825 = vunpack.c.l.b16 %v788
    %v826 = vunpack.c.l.b16 %v789
    %v827 = vunpack.c.l.b16 %v790
    %v828 = vunpack.c.l.b16 %v791
    %v829 = vunpack.c.l.b16 %v792
    %v830 = vunpack.c.l.b16 %v793
    %v831 = vunpack.c.l.b16 %v794
    %v832 = vunpack.c.l.b16 %v795
    %v833 = vunpack.c.l.b16 %v796
    %v834 = vunpack.c.l.b16 %v797
    %v835 = vunpack.c.l.b16 %v798
    %v836 = vpack.c.b16 %v821, %v820
    %v837 = vpack.c.b16 %v823, %v822
    %v838 = vpack.c.b16 %v825, %v824
    %v839 = vpack.c.b16 %v827, %v826
    %v840 = vpack.c.b16 %v829, %v828
    %v841 = vpack.c.b16 %v831, %v830
    %v842 = vpack.c.b16 %v833, %v832
    %v843 = vpack.c.b16 %v835, %v834
    %852 = vmatprep.subr.bf16.mxu0 0
    %853 = vmatpush1.bf16.msra.mxu0 %v843
    %854 = vmatprep.subr.bf16.mxu0 0
    %855 = vmatpush1.bf16.msra.mxu0 %v842
    %856 = vmatprep.subr.bf16.mxu0 0
    %857 = vmatpush1.bf16.msra.mxu0 %v841
    %858 = vmatprep.subr.bf16.mxu0 0
    %859 = vmatpush1.bf16.msra.mxu0 %v840
    %860 = vmatprep.subr.bf16.mxu0 0
    %861 = vmatpush1.bf16.msra.mxu0 %v839
    %862 = vmatprep.subr.bf16.mxu0 0
    %863 = vmatpush1.bf16.msra.mxu0 %v838
    %864 = vmatprep.subr.bf16.mxu0 0
    %865 = vmatpush1.bf16.msra.mxu0 %v837
    %866 = vmatprep.subr.bf16.mxu0 0
    %867 = vmatpush1.bf16.msra.mxu0 %v836
    %868 = vmatprep.subr.bf16.mxu0 0
    %869 = vmatpush2.bf16.msra.mxu0 0
    %870 = vmatprep.subr.bf16.mxu0 0
    %871 = vmatpush2.bf16.msra.mxu0 0
    %872 = vmatprep.subr.bf16.mxu0 0
    %873 = vmatpush2.bf16.msra.mxu0 0
    %874 = vmatprep.subr.bf16.mxu0 0
    %875 = vmatpush2.bf16.msra.mxu0 0
    %876 = vmatprep.subr.bf16.mxu0 0
    %877 = vmatpush2.bf16.msra.mxu0 0
    %878 = vmatprep.subr.bf16.mxu0 0
    %879 = vmatpush2.bf16.msra.mxu0 0
    %880 = vmatprep.subr.bf16.mxu0 0
    %881 = vmatpush2.bf16.msra.mxu0 0
    %882 = vmatprep.subr.bf16.mxu0 0
    %883 = vmatpush2.bf16.msra.mxu0 0
    %884 = vmatprep.mubr.bf16.mxu0 0
    %885 = vmatmul.mubr.bf16.gmra.mxu0 %v803
    %v886 = vpop.f32.mrf.mxu0
    %v887 = vadd.f32 0.0, %v886
    %v888 = vpop.f32.mrf.mxu0
    %v889 = vpop.f32.mrf.mxu0
    %v890 = vpop.f32.mrf.mxu0
    %891 = vdwg.mxu0
    %v892 = vmul.f32 %v779, 0.03125
    %v893 = vmul.f32 %v887, 0.03125
    %v894 = vmul.f32 %v892, %v892
    %v895 = vsub.f32 %v893, %v894
    %v896 = vmax.f32 %v895, 0.0
    %v897 = vadd.f32 %v896, 1e-05
    %v898 = vrsqrt.pop %v897
    %v899 = vpack.c.bf16 %v892, %v892
    %v901 = vsel %vm395, %v899, 0
    %v904 = vsel %vm399, %v799, 0
    %906 = vmatprep.subr.bf16.mxu0 0
    %907 = vmatpush1.bf16.msra.mxu0 0
    %908 = vmatprep.subr.bf16.mxu0 0
    %909 = vmatpush1.bf16.msra.mxu0 0
    %910 = vmatprep.subr.bf16.mxu0 0
    %911 = vmatpush1.bf16.msra.mxu0 0
    %912 = vmatprep.subr.bf16.mxu0 0
    %913 = vmatpush1.bf16.msra.mxu0 0
    %914 = vmatprep.subr.bf16.mxu0 0
    %915 = vmatpush1.bf16.msra.mxu0 0
    %916 = vmatprep.subr.bf16.mxu0 0
    %917 = vmatpush1.bf16.msra.mxu0 0
    %918 = vmatprep.subr.bf16.mxu0 0
    %919 = vmatpush1.bf16.msra.mxu0 0
    %920 = vmatprep.subr.bf16.mxu0 0
    %921 = vmatpush1.bf16.msra.mxu0 %v904
    %922 = vmatprep.subr.bf16.mxu0 0
    %923 = vmatpush2.bf16.msra.mxu0 0
    %924 = vmatprep.subr.bf16.mxu0 0
    %925 = vmatpush2.bf16.msra.mxu0 0
    %926 = vmatprep.subr.bf16.mxu0 0
    %927 = vmatpush2.bf16.msra.mxu0 0
    %928 = vmatprep.subr.bf16.mxu0 0
    %929 = vmatpush2.bf16.msra.mxu0 0
    %930 = vmatprep.subr.bf16.mxu0 0
    %931 = vmatpush2.bf16.msra.mxu0 0
    %932 = vmatprep.subr.bf16.mxu0 0
    %933 = vmatpush2.bf16.msra.mxu0 0
    %934 = vmatprep.subr.bf16.mxu0 0
    %935 = vmatpush2.bf16.msra.mxu0 0
    %936 = vmatprep.subr.bf16.mxu0 0
    %937 = vmatpush2.bf16.msra.mxu0 0
    %938 = vmatprep.mubr.bf16.mxu0 0
    %939 = vmatmul.mubr.bf16.gmra.mxu0 %v901
    %v940 = vpop.f32.mrf.mxu0
    %v941 = vadd.f32 0.0, %v940
    %v942 = vpop.f32.mrf.mxu0
    %v943 = vpop.f32.mrf.mxu0
    %v944 = vpop.f32.mrf.mxu0
    %945 = vdwg.mxu0
    %v946 = vpack.c.bf16 %v898, %v898
    %v948 = vsel %vm395, %v946, 0
    %950 = vmatprep.subr.bf16.mxu0 0
    %951 = vmatpush1.bf16.msra.mxu0 0
    %952 = vmatprep.subr.bf16.mxu0 0
    %953 = vmatpush1.bf16.msra.mxu0 0
    %954 = vmatprep.subr.bf16.mxu0 0
    %955 = vmatpush1.bf16.msra.mxu0 0
    %956 = vmatprep.subr.bf16.mxu0 0
    %957 = vmatpush1.bf16.msra.mxu0 0
    %958 = vmatprep.subr.bf16.mxu0 0
    %959 = vmatpush1.bf16.msra.mxu0 0
    %960 = vmatprep.subr.bf16.mxu0 0
    %961 = vmatpush1.bf16.msra.mxu0 0
    %962 = vmatprep.subr.bf16.mxu0 0
    %963 = vmatpush1.bf16.msra.mxu0 0
    %964 = vmatprep.subr.bf16.mxu0 0
    %965 = vmatpush1.bf16.msra.mxu0 %v904
    %966 = vmatprep.subr.bf16.mxu0 0
    %967 = vmatpush2.bf16.msra.mxu0 0
    %968 = vmatprep.subr.bf16.mxu0 0
    %969 = vmatpush2.bf16.msra.mxu0 0
    %970 = vmatprep.subr.bf16.mxu0 0
    %971 = vmatpush2.bf16.msra.mxu0 0
    %972 = vmatprep.subr.bf16.mxu0 0
    %973 = vmatpush2.bf16.msra.mxu0 0
    %974 = vmatprep.subr.bf16.mxu0 0
    %975 = vmatpush2.bf16.msra.mxu0 0
    %976 = vmatprep.subr.bf16.mxu0 0
    %977 = vmatpush2.bf16.msra.mxu0 0
    %978 = vmatprep.subr.bf16.mxu0 0
    %979 = vmatpush2.bf16.msra.mxu0 0
    %980 = vmatprep.subr.bf16.mxu0 0
    %981 = vmatpush2.bf16.msra.mxu0 0
    %982 = vmatprep.mubr.bf16.mxu0 0
    %983 = vmatmul.mubr.bf16.gmra.mxu0 %v948
    %v984 = vpop.f32.mrf.mxu0
    %v985 = vadd.f32 0.0, %v984
    %v986 = vpop.f32.mrf.mxu0
    %v987 = vpop.f32.mrf.mxu0
    %v988 = vpop.f32.mrf.mxu0
    %989 = vdwg.mxu0
    %v990 = vsub.f32 %v777, %v941
    %v991 = vmul.f32 %v990, %v985
    %v993 = vlaneseq
    %v994 = vshrl.u32 %v993, 7
    %v995 = vsub.s32 0, %v994
    %v996 = vrot.slane %v800, %v995
    %v998 = vmul.f32 %v991, %v996
    %v1000 = vlaneseq
    %v1001 = vshrl.u32 %v1000, 7
    %v1002 = vsub.s32 0, %v1001
    %v1003 = vrot.slane %v801, %v1002
    %v1005 = vadd.f32 %v998, %v1003
    %v1006 = vpack.c.bf16 %v1005, %v1005
    %vm1007 = vcmp.gt.bf16.partialorder %v1006, 0
    %v1008 = vmin.bf16 %v1006, 0
    %v1010 = vmul.bf16 %v1008, 1069105081
    %v1011 = vpow.bf16.pop %v1010
    %v1012 = vsub.bf16 %v1011, 1065369472
    %v1013 = vsel %vm1007, %v1006, %v1012
    %v1014 = vld [vmem:[%s13] sm:$0xf]
    %v1015 = vld [vmem:[%s13 + $0x4] sm:$0xf]
    %v1016 = vld [vmem:[%s13 + $0x8] sm:$0xf]
    %v1017 = vld [vmem:[%s13 + $0xc] sm:$0xf]
    %v1018 = vld [vmem:[%s13 + $0x10] sm:$0xf]
    %v1019 = vld [vmem:[%s13 + $0x14] sm:$0xf]
    %v1020 = vld [vmem:[%s13 + $0x18] sm:$0xf]
    %v1021 = vld [vmem:[%s13 + $0x1c] sm:$0xf]
    %v1022 = vld [vmem:[%s13 + $0x20] sm:$0xf]
    %v1023 = vld [vmem:[%s13 + $0x24] sm:$0xf]
    %v1024 = vld [vmem:[%s13 + $0x28] sm:$0xf]
    %v1025 = vld [vmem:[%s13 + $0x2c] sm:$0xf]
    %v1026 = vld [vmem:[%s13 + $0x30] sm:$0xf]
    %v1027 = vld [vmem:[%s13 + $0x34] sm:$0xf]
    %v1028 = vld [vmem:[%s13 + $0x38] sm:$0xf]
    %v1029 = vld [vmem:[%s13 + $0x3c] sm:$0xf]
    %v1030 = vld [vmem:[%s14] sm:$0x1]
    %v1032 = vlaneseq
    %v1033 = vshrl.u32 %v1032, 7
    %v1034 = vsub.s32 0, %v1033
    %v1035 = vrot.slane %v1030, %v1034
    %v1053 = vunpack.c.l.b16 %v1014
    %v1054 = vunpack.c.l.b16 %v1015
    %v1055 = vunpack.c.l.b16 %v1016
    %v1056 = vunpack.c.l.b16 %v1017
    %v1057 = vunpack.c.l.b16 %v1018
    %v1058 = vunpack.c.l.b16 %v1019
    %v1059 = vunpack.c.l.b16 %v1020
    %v1060 = vunpack.c.l.b16 %v1021
    %v1061 = vunpack.c.l.b16 %v1022
    %v1062 = vunpack.c.l.b16 %v1023
    %v1063 = vunpack.c.l.b16 %v1024
    %v1064 = vunpack.c.l.b16 %v1025
    %v1065 = vunpack.c.l.b16 %v1026
    %v1066 = vunpack.c.l.b16 %v1027
    %v1067 = vunpack.c.l.b16 %v1028
    %v1068 = vunpack.c.l.b16 %v1029
    %v1069 = vpack.c.b16 %v1054, %v1053
    %v1070 = vpack.c.b16 %v1056, %v1055
    %v1071 = vpack.c.b16 %v1058, %v1057
    %v1072 = vpack.c.b16 %v1060, %v1059
    %v1073 = vpack.c.b16 %v1062, %v1061
    %v1074 = vpack.c.b16 %v1064, %v1063
    %v1075 = vpack.c.b16 %v1066, %v1065
    %v1076 = vpack.c.b16 %v1068, %v1067
    %1085 = vmatprep.subr.bf16.mxu0 0
    %1086 = vmatpush1.bf16.msra.mxu0 %v1076
    %1087 = vmatprep.subr.bf16.mxu0 0
    %1088 = vmatpush1.bf16.msra.mxu0 %v1075
    %1089 = vmatprep.subr.bf16.mxu0 0
    %1090 = vmatpush1.bf16.msra.mxu0 %v1074
    %1091 = vmatprep.subr.bf16.mxu0 0
    %1092 = vmatpush1.bf16.msra.mxu0 %v1073
    %1093 = vmatprep.subr.bf16.mxu0 0
    %1094 = vmatpush1.bf16.msra.mxu0 %v1072
    %1095 = vmatprep.subr.bf16.mxu0 0
    %1096 = vmatpush1.bf16.msra.mxu0 %v1071
    %1097 = vmatprep.subr.bf16.mxu0 0
    %1098 = vmatpush1.bf16.msra.mxu0 %v1070
    %1099 = vmatprep.subr.bf16.mxu0 0
    %1100 = vmatpush1.bf16.msra.mxu0 %v1069
    %1101 = vmatprep.subr.bf16.mxu0 0
    %1102 = vmatpush2.bf16.msra.mxu0 0
    %1103 = vmatprep.subr.bf16.mxu0 0
    %1104 = vmatpush2.bf16.msra.mxu0 0
    %1105 = vmatprep.subr.bf16.mxu0 0
    %1106 = vmatpush2.bf16.msra.mxu0 0
    %1107 = vmatprep.subr.bf16.mxu0 0
    %1108 = vmatpush2.bf16.msra.mxu0 0
    %1109 = vmatprep.subr.bf16.mxu0 0
    %1110 = vmatpush2.bf16.msra.mxu0 0
    %1111 = vmatprep.subr.bf16.mxu0 0
    %1112 = vmatpush2.bf16.msra.mxu0 0
    %1113 = vmatprep.subr.bf16.mxu0 0
    %1114 = vmatpush2.bf16.msra.mxu0 0
    %1115 = vmatprep.subr.bf16.mxu0 0
    %1116 = vmatpush2.bf16.msra.mxu0 0
    %1117 = vmatprep.mubr.bf16.mxu0 0
    %1118 = vmatmul.mubr.bf16.gmra.mxu0 %v1013
    %v1119 = vpop.f32.mrf.mxu0
    %v1120 = vadd.f32 %v1035, %v1119
    %v1121 = vpop.f32.mrf.mxu0
    %v1122 = vpop.f32.mrf.mxu0
    %v1123 = vpop.f32.mrf.mxu0
    %1124 = vdwg.mxu0
    %vm1125 = vcmask 523264
    %v1126 = vsel %vm1125, %v1120, 0.0
    %1127 = vadd.xlane.f32.xlu0 %v1126
    %v1128 = vpop.xlane.xlu0 %1127
    %v1129 = vrcp.pop 64.0
    %v1130 = vmul.f32 %v1128, %v1129
    %v1131 = vsub.f32 %v1120, %v1130
    %v1132 = vmul.f32 %v1131, %v1131
    %v1133 = vsel %vm1125, %v1132, 0.0
    %1134 = vadd.xlane.f32.xlu0 %v1133
    %v1135 = vpop.xlane.xlu0 %1134
    %v1136 = vmul.f32 %v1135, %v1129
    %v1137 = vadd.f32 %v1136, 1e-05
    %v1138 = vrsqrt.pop %v1137
    %v1139 = vmul.f32 %v1131, %v1138
    %v1140 = vld [vmem:[%s15] sm:$0x1]
    %v1142 = vlaneseq
    %v1143 = vshrl.u32 %v1142, 7
    %v1144 = vsub.s32 0, %v1143
    %v1145 = vrot.slane %v1140, %v1144
    %v1147 = vmul.f32 %v1139, %v1145
    %v1148 = vld [vmem:[%s16] sm:$0x1]
    %v1150 = vlaneseq
    %v1151 = vshrl.u32 %v1150, 7
    %v1152 = vsub.s32 0, %v1151
    %v1153 = vrot.slane %v1148, %v1152
    %v1155 = vadd.f32 %v1147, %v1153
    %v1156 = vxor.u32 %v1155, 2147483648
    %v1157 = vmul.f32 %v1156, 1.442695
    %v1158 = vpow.pop %v1157
    %v1159 = vadd.f32 %v1158, 1.0
    %v1160 = vrcp.pop %v1159
    %v1161 = vmul.f32 1.0, %v1160
    %v1162 = vmul.f32 %v1155, %v1161
    %1163 = vst.msk [vmem:[#allocation2] sm:$0xff] %vm1125, %v1162
    // Predicated region
    $region70: #{bottom_model.1} parent=1 // pred_check
      _
    $region71: #{bottom_model.1} parent=1 // pred_check_branch
      %1165 = sbr.rel (0) target = $region73
    $region72: #{bottom_model.1} parent=1 // pred_region
      %s1167 = ssub.s32 128, 128
      %1168 = vsyncadd [#allocation3], %s1167
      %s1170 = sshll.u32 [#allocation2], 4
      %s1171 = int_to_ptr.vmem [resolvable:$true] %s1170
      %1173 = dma.vmem_to_hbm [thread:$0]  %s1171, 128, %s17, [#allocation3]
    $region73: #{bottom_model.1} parent=1 // pred_fallthru
      _
    // Predicated region
    $region74: #{bottom_model.1} parent=1 // pred_check
      _
    $region75: #{bottom_model.1} parent=1 // pred_check_branch
      %1175 = sbr.rel (0) target = $region77
    $region76: #{bottom_model.1} parent=1 // pred_region
      %1176 = dma.done [#allocation3], 128
    $region77: #{bottom_model.1} parent=1 // pred_fallthru
      _
    %1177 = vsyncpa [#allocation3], 1

</llo_original>
